<compile_context>
chip_gen: v7x
topology: tpu7x:2x2x1
jax: 0.10.0
libtpu: 0.0.40
codegen_flags: <defaults>
</compile_context>

<pallas_src>
import numpy as np
import jax
import jax.numpy as jnp
from jax import lax
from jax.experimental import pallas as pl
from jax.experimental.pallas import tpu as pltpu


# ---------------------------------------------------------------------------
# Parameter-free "weights": pooling / bilinear-interp matrices (host-side).
# ---------------------------------------------------------------------------
def avg_pool_matrix(in_size: int, scale: int) -> np.ndarray:
    out = in_size // scale
    m = np.zeros((out, in_size), np.float64)
    for p in range(out):
        m[p, p * scale:(p + 1) * scale] = 1.0 / scale
    return m


def bilinear_matrix(out_size: int, in_size: int) -> np.ndarray:
    # PyTorch F.interpolate(mode='bilinear', align_corners=False) semantics.
    m = np.zeros((out_size, in_size), np.float64)
    scale = in_size / out_size
    for i in range(out_size):
        src = (i + 0.5) * scale - 0.5
        src = max(src, 0.0)
        x0 = min(int(np.floor(src)), in_size - 1)
        x1 = min(x0 + 1, in_size - 1)
        frac = src - x0
        m[i, x0] += 1.0 - frac
        m[i, x1] += frac
    return m


def _round_up(v: int, m: int) -> int:
    return ((v + m - 1) // m) * m


# ---------------------------------------------------------------------------
# Pallas kernel: one channel-block (all batch + spatial) per grid step.
# ---------------------------------------------------------------------------
def naive_recon_kernel(x_ref, op_ref, comp_ref, recon_ref):
    # x_ref:     (N, Cb, HW)      flattened input channels (Cb % 8 == 0)
    # op_ref:    (HW, RF + CFp)   fused [pool+bilinear | pool(lane-padded)] op
    # comp_ref:  (N, Cb, CFp)     CFp = ceil(Hc*Wc/128)*128  (lane dense)
    # recon_ref: (N, Cb, RF)      RF = 32*32 = 1024          (lane dense)
    n, cb, hw = x_ref.shape
    rf = recon_ref.shape[-1]
    cfp = comp_ref.shape[-1]
    m = n * cb

    xf = x_ref[...].reshape(m, hw)               # sublane-aligned fold (free)

    # Single MXU matmul produces both outputs; slices land on 128-lane tiles.
    y = jnp.dot(xf, op_ref[...], preferred_element_type=jnp.float32)
    recon = y[:, :rf]                            # (M, 1024)
    comp = y[:, rf:]                             # (M, CFp)
    comp_ref[...] = comp.reshape(n, cb, cfp).astype(comp_ref.dtype)

    # Per-channel normalization over (N, 32, 32): one lane-reduce for the
    # mean, then two-pass variance on the centered slab (needed for output).
    inv_cnt = jnp.float32(1.0 / (n * rf))
    s1 = jnp.sum(recon, axis=-1, keepdims=True)                       # (M, 1)
    mean = s1.reshape(n, cb, 1).sum(axis=0, keepdims=True) * inv_cnt  # (1,Cb,1)
    mean_m = jnp.broadcast_to(mean, (n, cb, 1)).reshape(m, 1)
    centered = recon - mean_m                                         # (M, RF)
    s2 = jnp.sum(centered * centered, axis=-1, keepdims=True)         # (M, 1)
    var = s2.reshape(n, cb, 1).sum(axis=0, keepdims=True) * inv_cnt   # (1,Cb,1)
    inv_std = lax.rsqrt(var)     # no eps: matches reference (x - mean) / std
    inv_std_m = jnp.broadcast_to(inv_std, (n, cb, 1)).reshape(m, 1)
    recon_ref[...] = (centered * inv_std_m).reshape(n, cb, rf).astype(
        recon_ref.dtype)


# ---------------------------------------------------------------------------
# Hardware introspection (best-effort, all failures fall back to safe values).
# ---------------------------------------------------------------------------
def _hw_info():
    vmem_bytes, mxu_rows, num_tc = 128 << 20, 256, 1
    try:
        vmem_bytes = int(pltpu.get_tpu_info().vmem_capacity_bytes)
    except Exception:
        pass
    try:
        kind = jax.devices()[0].device_kind.lower()
        if "v5" in kind or "v4" in kind:            # 128-row MXU generations
            mxu_rows = 128
        if "v7" in kind or "v5p" in kind or "v4" in kind:
            num_tc = 2                              # 2 TensorCores / megacore
    except Exception:
        pass
    return vmem_bytes, mxu_rows, num_tc


# ---------------------------------------------------------------------------
# Wrapper
# ---------------------------------------------------------------------------
def naive_recon(x, scale: int, out_size: int = 32):
    """x: (N,C,H,W) -> (compressed (N,C,H//s,W//s), reconstructed (N,C,32,32))."""
    N, C, H, W = x.shape
    Hc, Wc = H // scale, W // scale
    OUT = out_size
    HW, CF, RF = H * W, Hc * Wc, OUT * OUT
    CFp = _round_up(CF, 128)                         # lane-dense comp output

    vmem_bytes, mxu_rows, num_tc = _hw_info()
    vmem_budget = int(min(0.6 * vmem_bytes, 80 << 20))   # ~38 MiB on v7x

    # ---- channel blocking: fill MXU rows, stay sublane aligned --------------
    cpad8 = _round_up(C, 8)
    cb = min(_round_up(max(pl.cdiv(mxu_rows, N), 8), 8), cpad8)

    def _est(cb_):                                   # per-step VMEM working set
        blk_in = 2 * 4 * N * cb_ * HW                # double-buffered input
        blk_out = 2 * 4 * N * cb_ * (RF + CFp)       # double-buffered outputs
        op_buf = 2 * 4 * HW * (RF + CFp)             # operator (worst-case 2x)
        temps = 4 * N * cb_ * (2 * RF + CFp + HW)    # y / centered / xf
        return blk_in + blk_out + op_buf + temps + (2 << 20)

    while cb > 8 and _est(cb) > vmem_budget:
        cb -= 8
    cpad = _round_up(cpad8, cb)
    if num_tc >= 2 and cpad // cb < 2 and cb >= 16:  # give 2nd core work (v7x)
        cb = max(8, (cb // 2 // 8) * 8)
        cpad = _round_up(cpad8, cb)
    vmem_limit = int(min(max(_est(cb), 16 << 20), vmem_budget))

    # ---- host-side fused operator: [kron(Mh,Mw)^T | kron(Ah,Aw)^T padded] ---
    ah = avg_pool_matrix(H, scale)                       # (Hc, H)
    aw = avg_pool_matrix(W, scale)                       # (Wc, W)
    mh = bilinear_matrix(OUT, Hc) @ ah                   # (OUT, H)
    mw = bilinear_matrix(OUT, Wc) @ aw                   # (OUT, W)
    kc = np.zeros((HW, CFp), np.float32)
    kc[:, :CF] = np.kron(ah, aw).T                       # lane-padded pool op
    kr = np.kron(mh, mw).T.astype(np.float32)            # (HW, RF)
    fused_op = jnp.asarray(np.concatenate([kr, kc], axis=1))   # (HW, RF+CFp)

    # ---- input: free spatial flatten + zero channel padding ----------------
    xf = x.reshape(N, C, HW)
    if cpad != C:
        xf = jnp.pad(xf, ((0, 0), (0, cpad - C), (0, 0)))

    def _build(op_pipeline_mode):
        op_kwargs = ({} if op_pipeline_mode is None
                     else {"pipeline_mode": op_pipeline_mode})
        return pl.pallas_call(
            naive_recon_kernel,
            out_shape=(
                jax.ShapeDtypeStruct((N, cpad, CFp), x.dtype),
                jax.ShapeDtypeStruct((N, cpad, RF), x.dtype),
            ),
            grid_spec=pltpu.PrefetchScalarGridSpec(
                num_scalar_prefetch=0,
                grid=(cpad // cb,),
                in_specs=[
                    pl.BlockSpec((N, cb, HW), lambda c: (0, c, 0)),
                    pl.BlockSpec((HW, RF + CFp), lambda c: (0, 0), **op_kwargs),
                ],
                out_specs=[
                    pl.BlockSpec((N, cb, CFp), lambda c: (0, c, 0)),
                    pl.BlockSpec((N, cb, RF), lambda c: (0, c, 0)),
                ],
            ),
            compiler_params=pltpu.CompilerParams(
                dimension_semantics=("parallel",),
                vmem_limit_bytes=vmem_limit),
        )

    try:
        # Grid-invariant operator block -> single VMEM buffer is sufficient.
        comp_f, recon_f = _build(pl.Buffered(1))(xf, fused_op)
    except Exception:
        # Fallback for jax versions rejecting buffer_count=1; the extra buffer
        # is already covered by the conservative VMEM estimate.
        comp_f, recon_f = _build(None)(xf, fused_op)

    compressed = comp_f[:, :C, :CF].reshape(N, C, Hc, Wc)
    reconstructed = recon_f[:, :C, :].reshape(N, C, OUT, OUT)
    return compressed, reconstructed


# ---------------------------------------------------------------------------
# Pure-JAX reference (independent separable factorization) for a sanity check.
# ---------------------------------------------------------------------------
def naive_recon_ref(x, scale: int, out_size: int = 32):
    N, C, H, W = x.shape
    ah = jnp.asarray(avg_pool_matrix(H, scale).astype(np.float32))
    aw = jnp.asarray(avg_pool_matrix(W, scale).astype(np.float32))
    bh = jnp.asarray(bilinear_matrix(out_size, H // scale).astype(np.float32))
    bw = jnp.asarray(bilinear_matrix(out_size, W // scale).astype(np.float32))
    comp = jnp.einsum('ph,nchw,qw->ncpq', ah, x, aw,
                      precision=lax.Precision.HIGHEST)
    grow = jnp.einsum('ip,ncpq,jq->ncij', bh, comp, bw,
                      precision=lax.Precision.HIGHEST)
    mean = grow.mean(axis=(0, 2, 3), keepdims=True)
    std = jnp.sqrt(((grow - mean) ** 2).mean(axis=(0, 2, 3), keepdims=True))
    return comp, (grow - mean) / std


if __name__ == "__main__":
    key = jax.random.PRNGKey(0)
    N, C, H, W = 2, 4, 16, 16
    scale = 2
    x = jax.random.normal(key, (N, C, H, W), dtype=jnp.float32)

    compressed, reconstructed = naive_recon(x, scale)
    jax.block_until_ready((compressed, reconstructed))

    comp_expected, recon_expected = naive_recon_ref(x, scale)
    assert compressed.shape == (N, C, H // scale, W // scale)
    assert reconstructed.shape == (N, C, 32, 32)
    np.testing.assert_allclose(np.asarray(compressed), np.asarray(comp_expected),
                               rtol=1e-4, atol=2e-5)
    np.testing.assert_allclose(np.asarray(reconstructed), np.asarray(recon_expected),
                               rtol=1e-4, atol=2e-4)
    print("KERNEL_OK")
</pallas_src>

<mosaic_0001>
module attributes {stable_mosaic.version = 11 : i64} {
  func.func @naive_recon_kernel(%arg0: i32, %arg1: memref<2x8x256xf32, #tpu.memory_space<vmem>>, %arg2: memref<256x1152xf32, #tpu.memory_space<vmem>>, %arg3: memref<2x8x128xf32, #tpu.memory_space<vmem>>, %arg4: memref<2x8x1024xf32, #tpu.memory_space<vmem>>) attributes {dimension_semantics = [#tpu.dimension_semantics<parallel>], iteration_bounds = array<i64: 1>, scalar_prefetch = 0 : i64, scratch_operands = 0 : i64, tpu.core_type = #tpu.core_type<tc>, window_params = [{transform_indices = @transform_0, window_bounds = array<i64: 2, 8, 256>}, {pipeline_mode = #tpu.pipeline_mode<synchronous>, transform_indices = @transform_1, window_bounds = array<i64: 256, 1152>}, {transform_indices = @transform_2, window_bounds = array<i64: 2, 8, 128>}, {transform_indices = @transform_3, window_bounds = array<i64: 2, 8, 1024>}]} {
    %c0 = arith.constant 0 : index
    %c0_0 = arith.constant 0 : index
    %c0_1 = arith.constant 0 : index
    %0 = vector.load %arg1[%c0, %c0_0, %c0_1] : memref<2x8x256xf32, #tpu.memory_space<vmem>>, vector<2x8x256xf32>
    %1 = vector.shape_cast %0 : vector<2x8x256xf32> to vector<16x256xf32>
    %c0_2 = arith.constant 0 : index
    %c0_3 = arith.constant 0 : index
    %2 = vector.load %arg2[%c0_2, %c0_3] : memref<256x1152xf32, #tpu.memory_space<vmem>>, vector<256x1152xf32>
    %cst = arith.constant dense<0.000000e+00> : vector<16x1152xf32>
    %3 = tpu.matmul %1, %2, %cst {dimension_numbers = #tpu.dot_dimension_numbers<[1], [0], [0], [1], [0, 0, 1, 1], [], []>} : vector<16x256xf32>, vector<256x1152xf32>, vector<16x1152xf32> -> vector<16x1152xf32>
    %4 = vector.extract_strided_slice %3 {offsets = [0, 0], sizes = [16, 1024], strides = [1, 1]} : vector<16x1152xf32> to vector<16x1024xf32>
    %5 = vector.extract_strided_slice %3 {offsets = [0, 1024], sizes = [16, 128], strides = [1, 1]} : vector<16x1152xf32> to vector<16x128xf32>
    %6 = vector.shape_cast %5 : vector<16x128xf32> to vector<2x8x128xf32>
    %c0_4 = arith.constant 0 : index
    %c0_5 = arith.constant 0 : index
    %c0_6 = arith.constant 0 : index
    %7 = vector.load %arg3[%c0_4, %c0_5, %c0_6] : memref<2x8x128xf32, #tpu.memory_space<vmem>>, vector<2x8x128xf32>
    tpu.vector_store %arg3[%c0_4, %c0_5, %c0_6], %6 {strides = array<i32>} : memref<2x8x128xf32, #tpu.memory_space<vmem>>, vector<2x8x128xf32>,
    %cst_7 = arith.constant dense<0.000000e+00> : vector<16xf32>
    %8 = vector.multi_reduction <add>, %4, %cst_7 [1] : vector<16x1024xf32> to vector<16xf32>
    %9 = vector.shape_cast %8 : vector<16xf32> to vector<16x1xf32>
    %10 = vector.shape_cast %9 : vector<16x1xf32> to vector<2x8x1xf32>
    %cst_8 = arith.constant dense<0.000000e+00> : vector<8x1xf32>
    %11 = vector.multi_reduction <add>, %10, %cst_8 [0] : vector<2x8x1xf32> to vector<8x1xf32>
    %12 = vector.shape_cast %11 : vector<8x1xf32> to vector<1x8x1xf32>
    %cst_9 = arith.constant 4.8828125E-4 : f32
    %13 = vector.broadcast %cst_9 : f32 to vector<1x8x1xf32>
    %14 = arith.mulf %12, %13 : vector<1x8x1xf32>
    %15 = vector.shape_cast %14 : vector<1x8x1xf32> to vector<1x8x1xf32>
    %16 = vector.broadcast %15 : vector<1x8x1xf32> to vector<2x8x1xf32>
    %17 = vector.shape_cast %16 : vector<2x8x1xf32> to vector<16x1xf32>
    %18 = vector.broadcast %17 : vector<16x1xf32> to vector<16x1024xf32>
    %19 = arith.subf %4, %18 : vector<16x1024xf32>
    %20 = arith.mulf %19, %19 : vector<16x1024xf32>
    %cst_10 = arith.constant dense<0.000000e+00> : vector<16xf32>
    %21 = vector.multi_reduction <add>, %20, %cst_10 [1] : vector<16x1024xf32> to vector<16xf32>
    %22 = vector.shape_cast %21 : vector<16xf32> to vector<16x1xf32>
    %23 = vector.shape_cast %22 : vector<16x1xf32> to vector<2x8x1xf32>
    %cst_11 = arith.constant dense<0.000000e+00> : vector<8x1xf32>
    %24 = vector.multi_reduction <add>, %23, %cst_11 [0] : vector<2x8x1xf32> to vector<8x1xf32>
    %25 = vector.shape_cast %24 : vector<8x1xf32> to vector<1x8x1xf32>
    %cst_12 = arith.constant 4.8828125E-4 : f32
    %26 = vector.broadcast %cst_12 : f32 to vector<1x8x1xf32>
    %27 = arith.mulf %25, %26 : vector<1x8x1xf32>
    %28 = math.rsqrt %27 : vector<1x8x1xf32>
    %29 = vector.shape_cast %28 : vector<1x8x1xf32> to vector<1x8x1xf32>
    %30 = vector.broadcast %29 : vector<1x8x1xf32> to vector<2x8x1xf32>
    %31 = vector.shape_cast %30 : vector<2x8x1xf32> to vector<16x1xf32>
    %32 = vector.broadcast %31 : vector<16x1xf32> to vector<16x1024xf32>
    %33 = arith.mulf %19, %32 : vector<16x1024xf32>
    %34 = vector.shape_cast %33 : vector<16x1024xf32> to vector<2x8x1024xf32>
    %c0_13 = arith.constant 0 : index
    %c0_14 = arith.constant 0 : index
    %c0_15 = arith.constant 0 : index
    %35 = vector.load %arg4[%c0_13, %c0_14, %c0_15] : memref<2x8x1024xf32, #tpu.memory_space<vmem>>, vector<2x8x1024xf32>
    tpu.vector_store %arg4[%c0_13, %c0_14, %c0_15], %34 {strides = array<i32>} : memref<2x8x1024xf32, #tpu.memory_space<vmem>>, vector<2x8x1024xf32>,
    return
  }
  func.func @transform_0(%arg0: i32) -> (i32, i32, i32) {
    %c0_i32 = arith.constant 0 : i32
    %c0_i32_0 = arith.constant 0 : i32
    %c0_i32_1 = arith.constant 0 : i32
    return %c0_i32, %arg0, %c0_i32_0 : i32, i32, i32
  }
  func.func @transform_1(%arg0: i32) -> (i32, i32) {
    %c0_i32 = arith.constant 0 : i32
    %c0_i32_0 = arith.constant 0 : i32
    %c0_i32_1 = arith.constant 0 : i32
    return %c0_i32, %c0_i32_0 : i32, i32
  }
  func.func @transform_2(%arg0: i32) -> (i32, i32, i32) {
    %c0_i32 = arith.constant 0 : i32
    %c0_i32_0 = arith.constant 0 : i32
    %c0_i32_1 = arith.constant 0 : i32
    return %c0_i32, %arg0, %c0_i32_0 : i32, i32, i32
  }
  func.func @transform_3(%arg0: i32) -> (i32, i32, i32) {
    %c0_i32 = arith.constant 0 : i32
    %c0_i32_0 = arith.constant 0 : i32
    %c0_i32_1 = arith.constant 0 : i32
    return %c0_i32, %arg0, %c0_i32_0 : i32, i32, i32
  }
}

module attributes {stable_mosaic.version = 11 : i64} {
  func.func @naive_recon_kernel(%arg0: i32, %arg1: memref<2x8x256xf32, #tpu.memory_space<vmem>>, %arg2: memref<256x1152xf32, #tpu.memory_space<vmem>>, %arg3: memref<2x8x128xf32, #tpu.memory_space<vmem>>, %arg4: memref<2x8x1024xf32, #tpu.memory_space<vmem>>) attributes {dimension_semantics = [#tpu.dimension_semantics<parallel>], iteration_bounds = array<i64: 1>, scalar_prefetch = 0 : i64, scratch_operands = 0 : i64, tpu.core_type = #tpu.core_type<tc>, window_params = [{transform_indices = @transform_0, window_bounds = array<i64: 2, 8, 256>}, {pipeline_mode = #tpu.pipeline_mode<synchronous>, transform_indices = @transform_1, window_bounds = array<i64: 256, 1152>}, {transform_indices = @transform_2, window_bounds = array<i64: 2, 8, 128>}, {transform_indices = @transform_3, window_bounds = array<i64: 2, 8, 1024>}]} {
    %c0 = arith.constant 0 : index
    %c0_0 = arith.constant 0 : index
    %c0_1 = arith.constant 0 : index
    %0 = vector.load %arg1[%c0, %c0_0, %c0_1] : memref<2x8x256xf32, #tpu.memory_space<vmem>>, vector<2x8x256xf32>
    %1 = vector.shape_cast %0 : vector<2x8x256xf32> to vector<16x256xf32>
    %c0_2 = arith.constant 0 : index
    %c0_3 = arith.constant 0 : index
    %2 = vector.load %arg2[%c0_2, %c0_3] : memref<256x1152xf32, #tpu.memory_space<vmem>>, vector<256x1152xf32>
    %cst = arith.constant dense<0.000000e+00> : vector<16x1152xf32>
    %3 = tpu.matmul %1, %2, %cst {dimension_numbers = #tpu.dot_dimension_numbers<[1], [0], [0], [1], [0, 0, 1, 1], [], []>} : vector<16x256xf32>, vector<256x1152xf32>, vector<16x1152xf32> -> vector<16x1152xf32>
    %4 = vector.extract_strided_slice %3 {offsets = [0, 0], sizes = [16, 1024], strides = [1, 1]} : vector<16x1152xf32> to vector<16x1024xf32>
    %5 = vector.extract_strided_slice %3 {offsets = [0, 1024], sizes = [16, 128], strides = [1, 1]} : vector<16x1152xf32> to vector<16x128xf32>
    %6 = vector.shape_cast %5 : vector<16x128xf32> to vector<2x8x128xf32>
    %c0_4 = arith.constant 0 : index
    %c0_5 = arith.constant 0 : index
    %c0_6 = arith.constant 0 : index
    %7 = vector.load %arg3[%c0_4, %c0_5, %c0_6] : memref<2x8x128xf32, #tpu.memory_space<vmem>>, vector<2x8x128xf32>
    tpu.vector_store %arg3[%c0_4, %c0_5, %c0_6], %6 {strides = array<i32>} : memref<2x8x128xf32, #tpu.memory_space<vmem>>, vector<2x8x128xf32>,
    %cst_7 = arith.constant dense<0.000000e+00> : vector<16xf32>
    %8 = vector.multi_reduction <add>, %4, %cst_7 [1] : vector<16x1024xf32> to vector<16xf32>
    %9 = vector.shape_cast %8 : vector<16xf32> to vector<16x1xf32>
    %10 = vector.shape_cast %9 : vector<16x1xf32> to vector<2x8x1xf32>
    %cst_8 = arith.constant dense<0.000000e+00> : vector<8x1xf32>
    %11 = vector.multi_reduction <add>, %10, %cst_8 [0] : vector<2x8x1xf32> to vector<8x1xf32>
    %12 = vector.shape_cast %11 : vector<8x1xf32> to vector<1x8x1xf32>
    %cst_9 = arith.constant 4.8828125E-4 : f32
    %13 = vector.broadcast %cst_9 : f32 to vector<1x8x1xf32>
    %14 = arith.mulf %12, %13 : vector<1x8x1xf32>
    %15 = vector.shape_cast %14 : vector<1x8x1xf32> to vector<1x8x1xf32>
    %16 = vector.broadcast %15 : vector<1x8x1xf32> to vector<2x8x1xf32>
    %17 = vector.shape_cast %16 : vector<2x8x1xf32> to vector<16x1xf32>
    %18 = vector.broadcast %17 : vector<16x1xf32> to vector<16x1024xf32>
    %19 = arith.subf %4, %18 : vector<16x1024xf32>
    %20 = arith.mulf %19, %19 : vector<16x1024xf32>
    %cst_10 = arith.constant dense<0.000000e+00> : vector<16xf32>
    %21 = vector.multi_reduction <add>, %20, %cst_10 [1] : vector<16x1024xf32> to vector<16xf32>
    %22 = vector.shape_cast %21 : vector<16xf32> to vector<16x1xf32>
    %23 = vector.shape_cast %22 : vector<16x1xf32> to vector<2x8x1xf32>
    %cst_11 = arith.constant dense<0.000000e+00> : vector<8x1xf32>
    %24 = vector.multi_reduction <add>, %23, %cst_11 [0] : vector<2x8x1xf32> to vector<8x1xf32>
    %25 = vector.shape_cast %24 : vector<8x1xf32> to vector<1x8x1xf32>
    %cst_12 = arith.constant 4.8828125E-4 : f32
    %26 = vector.broadcast %cst_12 : f32 to vector<1x8x1xf32>
    %27 = arith.mulf %25, %26 : vector<1x8x1xf32>
    %28 = math.rsqrt %27 : vector<1x8x1xf32>
    %29 = vector.shape_cast %28 : vector<1x8x1xf32> to vector<1x8x1xf32>
    %30 = vector.broadcast %29 : vector<1x8x1xf32> to vector<2x8x1xf32>
    %31 = vector.shape_cast %30 : vector<2x8x1xf32> to vector<16x1xf32>
    %32 = vector.broadcast %31 : vector<16x1xf32> to vector<16x1024xf32>
    %33 = arith.mulf %19, %32 : vector<16x1024xf32>
    %34 = vector.shape_cast %33 : vector<16x1024xf32> to vector<2x8x1024xf32>
    %c0_13 = arith.constant 0 : index
    %c0_14 = arith.constant 0 : index
    %c0_15 = arith.constant 0 : index
    %35 = vector.load %arg4[%c0_13, %c0_14, %c0_15] : memref<2x8x1024xf32, #tpu.memory_space<vmem>>, vector<2x8x1024xf32>
    tpu.vector_store %arg4[%c0_13, %c0_14, %c0_15], %34 {strides = array<i32>} : memref<2x8x1024xf32, #tpu.memory_space<vmem>>, vector<2x8x1024xf32>,
    return
  }
  func.func @transform_0(%arg0: i32) -> (i32, i32, i32) {
    %c0_i32 = arith.constant 0 : i32
    %c0_i32_0 = arith.constant 0 : i32
    %c0_i32_1 = arith.constant 0 : i32
    return %c0_i32, %arg0, %c0_i32_0 : i32, i32, i32
  }
  func.func @transform_1(%arg0: i32) -> (i32, i32) {
    %c0_i32 = arith.constant 0 : i32
    %c0_i32_0 = arith.constant 0 : i32
    %c0_i32_1 = arith.constant 0 : i32
    return %c0_i32, %c0_i32_0 : i32, i32
  }
  func.func @transform_2(%arg0: i32) -> (i32, i32, i32) {
    %c0_i32 = arith.constant 0 : i32
    %c0_i32_0 = arith.constant 0 : i32
    %c0_i32_1 = arith.constant 0 : i32
    return %c0_i32, %arg0, %c0_i32_0 : i32, i32, i32
  }
  func.func @transform_3(%arg0: i32) -> (i32, i32, i32) {
    %c0_i32 = arith.constant 0 : i32
    %c0_i32_0 = arith.constant 0 : i32
    %c0_i32_1 = arith.constant 0 : i32
    return %c0_i32, %arg0, %c0_i32_0 : i32, i32, i32
  }
}

</mosaic_0001>

<llo_original>
// kernel: tpu_custom_call.1
$region0: #{tpu_custom_call.1}
  #allocation0 [shape = 'u32[]', space=smem, size = 0x4, offset = 0x4, fixed_abs, tag = 'smem constant byte address 0x4 - core index']
  #allocation1 [shape = 'u32[144,128]{1,0:T(1,128)}', space=vmem, size = 0x12000, scoped, tag = 'internal scratch']
  %s0 = inlined_call_operand.hbm [shape: f32[2,8,256], index: 0, kind: input, shape index: {}]
  %s1 = inlined_call_operand.hbm [shape: f32[256,1152], index: 1, kind: input, shape index: {}]
  %s2 = inlined_call_operand.hbm [shape: f32[2,8,128], index: 2, kind: output, shape index: {0}]
  %s3 = inlined_call_operand.hbm [shape: f32[2,8,1024], index: 3, kind: output, shape index: {1}]
  %4 = xla_tuple %s2, %s3
  %s5 = sld [smem:[#allocation0]]
  $region34: #{tpu_custom_call.1} parent=0
    _
  %s7 = ssub.s32 1, %s5
  %s8 = scalar_select 0, %s7, %s5
  $region1: #{tpu_custom_call.1} parent=0
    #allocation2 [shape = 'u8[16384]{0}', space=vmem, size = 0x4000, scoped, tag = 'input window, operand 0, single buffered']
    #allocation3 [shape = 's32[1]{0}', space=sflag, size = 0x4, scoped, tag = 'scoped memory for tpu_custom_call.1']
    #allocation4 [shape = 's32[1]{0}', space=sflag, size = 0x4, scoped, tag = 'scoped memory for tpu_custom_call.1']
    #allocation5 [shape = 'u8[1179648]{0}', space=vmem, size = 0x120000, scoped, tag = 'input window, operand 1, single buffered']
    #allocation6 [shape = 's32[1]{0}', space=sflag, size = 0x4, scoped, tag = 'scoped memory for tpu_custom_call.1']
    #allocation7 [shape = 'u8[8192]{0}', space=vmem, size = 0x2000, scoped, tag = 'output window, operand 0, single buffered']
    #allocation8 [shape = 'u8[65536]{0}', space=vmem, size = 0x10000, scoped, tag = 'output window, operand 1, single buffered']
    #allocation9 [shape = 's32[1]{0}', space=sflag, size = 0x4, scoped, tag = 'scoped memory for tpu_custom_call.1']
    %9 = vsyncpa [#allocation3], 0
    %10 = vsyncpa [#allocation6], 0
    %11 = vsyncpa [#allocation4], 0
    %12 = vsyncpa [#allocation9], 0
    // Predicated region
    $region2: #{tpu_custom_call.1} parent=1 // pred_check
      _
    $region3: #{tpu_custom_call.1} parent=1 // pred_check_branch
      %14 = sbr.rel (0) target = $region5
    $region4: #{tpu_custom_call.1} parent=1 // pred_region
      %s16 = ssub.s32 512, 512
      %17 = vsyncadd [#allocation3], %s16
      %s18 = sshll.u32 [#allocation2], 4
      %s19 = int_to_ptr.vmem [resolvable:$true] %s18
      %24 = dma.hbm_to_vmem [thread:$0]  %s0, 512, %s19, [#allocation3], 256, 256, 16
    $region5: #{tpu_custom_call.1} parent=1 // pred_fallthru
      _
    // Predicated region
    $region6: #{tpu_custom_call.1} parent=1 // pred_check
      _
    $region7: #{tpu_custom_call.1} parent=1 // pred_check_branch
      %26 = sbr.rel (0) target = $region9
    $region8: #{tpu_custom_call.1} parent=1 // pred_region
      %s28 = ssub.s32 36864, 36864
      %29 = vsyncadd [#allocation6], %s28
      %s30 = sshll.u32 [#allocation5], 4
      %s31 = int_to_ptr.vmem [resolvable:$true] %s30
      %36 = dma.hbm_to_vmem [thread:$0]  %s1, 36864, %s31, [#allocation6], 1152, 1152, 72
    $region9: #{tpu_custom_call.1} parent=1 // pred_fallthru
      _
    // Predicated region
    $region10: #{tpu_custom_call.1} parent=1 // pred_check
      _
    $region11: #{tpu_custom_call.1} parent=1 // pred_check_branch
      %38 = sbr.rel (0) target = $region13
    $region12: #{tpu_custom_call.1} parent=1 // pred_region
      %39 = dma.done [#allocation3], 512
    $region13: #{tpu_custom_call.1} parent=1 // pred_fallthru
      _
    // Predicated region
    $region14: #{tpu_custom_call.1} parent=1 // pred_check
      _
    $region15: #{tpu_custom_call.1} parent=1 // pred_check_branch
      %41 = sbr.rel (0) target = $region17
    $region16: #{tpu_custom_call.1} parent=1 // pred_region
      %42 = dma.done [#allocation6], 36864
    $region17: #{tpu_custom_call.1} parent=1 // pred_fallthru
      _
    %v43 = vld [vmem:[#allocation2] sm:$0xff]
    %v44 = vld [vmem:[#allocation2 + $0x8] sm:$0xff]
    %v45 = vld [vmem:[#allocation2 + $0x10] sm:$0xff]
    %v46 = vld [vmem:[#allocation2 + $0x18] sm:$0xff]
    %v47 = vld [vmem:[#allocation5] sm:$0xff]
    %v48 = vld [vmem:[#allocation5 + $0x8] sm:$0xff]
    %v49 = vld [vmem:[#allocation5 + $0x10] sm:$0xff]
    %v50 = vld [vmem:[#allocation5 + $0x18] sm:$0xff]
    %v51 = vld [vmem:[#allocation5 + $0x20] sm:$0xff]
    %v52 = vld [vmem:[#allocation5 + $0x28] sm:$0xff]
    %v53 = vld [vmem:[#allocation5 + $0x30] sm:$0xff]
    %v54 = vld [vmem:[#allocation5 + $0x38] sm:$0xff]
    %v55 = vld [vmem:[#allocation5 + $0x40] sm:$0xff]
    %v56 = vld [vmem:[#allocation5 + $0x48] sm:$0xff]
    %v57 = vld [vmem:[#allocation5 + $0x50] sm:$0xff]
    %v58 = vld [vmem:[#allocation5 + $0x58] sm:$0xff]
    %v59 = vld [vmem:[#allocation5 + $0x60] sm:$0xff]
    %v60 = vld [vmem:[#allocation5 + $0x68] sm:$0xff]
    %v61 = vld [vmem:[#allocation5 + $0x70] sm:$0xff]
    %v62 = vld [vmem:[#allocation5 + $0x78] sm:$0xff]
    %v63 = vld [vmem:[#allocation5 + $0x80] sm:$0xff]
    %v64 = vld [vmem:[#allocation5 + $0x88] sm:$0xff]
    %v65 = vld [vmem:[#allocation5 + $0x90] sm:$0xff]
    %v66 = vld [vmem:[#allocation5 + $0x98] sm:$0xff]
    %v67 = vld [vmem:[#allocation5 + $0xa0] sm:$0xff]
    %v68 = vld [vmem:[#allocation5 + $0xa8] sm:$0xff]
    %v69 = vld [vmem:[#allocation5 + $0xb0] sm:$0xff]
    %v70 = vld [vmem:[#allocation5 + $0xb8] sm:$0xff]
    %v71 = vld [vmem:[#allocation5 + $0xc0] sm:$0xff]
    %v72 = vld [vmem:[#allocation5 + $0xc8] sm:$0xff]
    %v73 = vld [vmem:[#allocation5 + $0xd0] sm:$0xff]
    %v74 = vld [vmem:[#allocation5 + $0xd8] sm:$0xff]
    %v75 = vld [vmem:[#allocation5 + $0xe0] sm:$0xff]
    %v76 = vld [vmem:[#allocation5 + $0xe8] sm:$0xff]
    %v77 = vld [vmem:[#allocation5 + $0xf0] sm:$0xff]
    %v78 = vld [vmem:[#allocation5 + $0xf8] sm:$0xff]
    %v79 = vld [vmem:[#allocation5 + $0x100] sm:$0xff]
    %v80 = vld [vmem:[#allocation5 + $0x108] sm:$0xff]
    %v81 = vld [vmem:[#allocation5 + $0x110] sm:$0xff]
    %v82 = vld [vmem:[#allocation5 + $0x118] sm:$0xff]
    %v83 = vld [vmem:[#allocation5 + $0x120] sm:$0xff]
    %v84 = vld [vmem:[#allocation5 + $0x128] sm:$0xff]
    %v85 = vld [vmem:[#allocation5 + $0x130] sm:$0xff]
    %v86 = vld [vmem:[#allocation5 + $0x138] sm:$0xff]
    %v87 = vld [vmem:[#allocation5 + $0x140] sm:$0xff]
    %v88 = vld [vmem:[#allocation5 + $0x148] sm:$0xff]
    %v89 = vld [vmem:[#allocation5 + $0x150] sm:$0xff]
    %v90 = vld [vmem:[#allocation5 + $0x158] sm:$0xff]
    %v91 = vld [vmem:[#allocation5 + $0x160] sm:$0xff]
    %v92 = vld [vmem:[#allocation5 + $0x168] sm:$0xff]
    %v93 = vld [vmem:[#allocation5 + $0x170] sm:$0xff]
    %v94 = vld [vmem:[#allocation5 + $0x178] sm:$0xff]
    %v95 = vld [vmem:[#allocation5 + $0x180] sm:$0xff]
    %v96 = vld [vmem:[#allocation5 + $0x188] sm:$0xff]
    %v97 = vld [vmem:[#allocation5 + $0x190] sm:$0xff]
    %v98 = vld [vmem:[#allocation5 + $0x198] sm:$0xff]
    %v99 = vld [vmem:[#allocation5 + $0x1a0] sm:$0xff]
    %v100 = vld [vmem:[#allocation5 + $0x1a8] sm:$0xff]
    %v101 = vld [vmem:[#allocation5 + $0x1b0] sm:$0xff]
    %v102 = vld [vmem:[#allocation5 + $0x1b8] sm:$0xff]
    %v103 = vld [vmem:[#allocation5 + $0x1c0] sm:$0xff]
    %v104 = vld [vmem:[#allocation5 + $0x1c8] sm:$0xff]
    %v105 = vld [vmem:[#allocation5 + $0x1d0] sm:$0xff]
    %v106 = vld [vmem:[#allocation5 + $0x1d8] sm:$0xff]
    %v107 = vld [vmem:[#allocation5 + $0x1e0] sm:$0xff]
    %v108 = vld [vmem:[#allocation5 + $0x1e8] sm:$0xff]
    %v109 = vld [vmem:[#allocation5 + $0x1f0] sm:$0xff]
    %v110 = vld [vmem:[#allocation5 + $0x1f8] sm:$0xff]
    %v111 = vld [vmem:[#allocation5 + $0x200] sm:$0xff]
    %v112 = vld [vmem:[#allocation5 + $0x208] sm:$0xff]
    %v113 = vld [vmem:[#allocation5 + $0x210] sm:$0xff]
    %v114 = vld [vmem:[#allocation5 + $0x218] sm:$0xff]
    %v115 = vld [vmem:[#allocation5 + $0x220] sm:$0xff]
    %v116 = vld [vmem:[#allocation5 + $0x228] sm:$0xff]
    %v117 = vld [vmem:[#allocation5 + $0x230] sm:$0xff]
    %v118 = vld [vmem:[#allocation5 + $0x238] sm:$0xff]
    %v119 = vld [vmem:[#allocation5 + $0x240] sm:$0xff]
    %v120 = vld [vmem:[#allocation5 + $0x248] sm:$0xff]
    %v121 = vld [vmem:[#allocation5 + $0x250] sm:$0xff]
    %v122 = vld [vmem:[#allocation5 + $0x258] sm:$0xff]
    %v123 = vld [vmem:[#allocation5 + $0x260] sm:$0xff]
    %v124 = vld [vmem:[#allocation5 + $0x268] sm:$0xff]
    %v125 = vld [vmem:[#allocation5 + $0x270] sm:$0xff]
    %v126 = vld [vmem:[#allocation5 + $0x278] sm:$0xff]
    %v127 = vld [vmem:[#allocation5 + $0x280] sm:$0xff]
    %v128 = vld [vmem:[#allocation5 + $0x288] sm:$0xff]
    %v129 = vld [vmem:[#allocation5 + $0x290] sm:$0xff]
    %v130 = vld [vmem:[#allocation5 + $0x298] sm:$0xff]
    %v131 = vld [vmem:[#allocation5 + $0x2a0] sm:$0xff]
    %v132 = vld [vmem:[#allocation5 + $0x2a8] sm:$0xff]
    %v133 = vld [vmem:[#allocation5 + $0x2b0] sm:$0xff]
    %v134 = vld [vmem:[#allocation5 + $0x2b8] sm:$0xff]
    %v135 = vld [vmem:[#allocation5 + $0x2c0] sm:$0xff]
    %v136 = vld [vmem:[#allocation5 + $0x2c8] sm:$0xff]
    %v137 = vld [vmem:[#allocation5 + $0x2d0] sm:$0xff]
    %v138 = vld [vmem:[#allocation5 + $0x2d8] sm:$0xff]
    %v139 = vld [vmem:[#allocation5 + $0x2e0] sm:$0xff]
    %v140 = vld [vmem:[#allocation5 + $0x2e8] sm:$0xff]
    %v141 = vld [vmem:[#allocation5 + $0x2f0] sm:$0xff]
    %v142 = vld [vmem:[#allocation5 + $0x2f8] sm:$0xff]
    %v143 = vld [vmem:[#allocation5 + $0x300] sm:$0xff]
    %v144 = vld [vmem:[#allocation5 + $0x308] sm:$0xff]
    %v145 = vld [vmem:[#allocation5 + $0x310] sm:$0xff]
    %v146 = vld [vmem:[#allocation5 + $0x318] sm:$0xff]
    %v147 = vld [vmem:[#allocation5 + $0x320] sm:$0xff]
    %v148 = vld [vmem:[#allocation5 + $0x328] sm:$0xff]
    %v149 = vld [vmem:[#allocation5 + $0x330] sm:$0xff]
    %v150 = vld [vmem:[#allocation5 + $0x338] sm:$0xff]
    %v151 = vld [vmem:[#allocation5 + $0x340] sm:$0xff]
    %v152 = vld [vmem:[#allocation5 + $0x348] sm:$0xff]
    %v153 = vld [vmem:[#allocation5 + $0x350] sm:$0xff]
    %v154 = vld [vmem:[#allocation5 + $0x358] sm:$0xff]
    %v155 = vld [vmem:[#allocation5 + $0x360] sm:$0xff]
    %v156 = vld [vmem:[#allocation5 + $0x368] sm:$0xff]
    %v157 = vld [vmem:[#allocation5 + $0x370] sm:$0xff]
    %v158 = vld [vmem:[#allocation5 + $0x378] sm:$0xff]
    %v159 = vld [vmem:[#allocation5 + $0x380] sm:$0xff]
    %v160 = vld [vmem:[#allocation5 + $0x388] sm:$0xff]
    %v161 = vld [vmem:[#allocation5 + $0x390] sm:$0xff]
    %v162 = vld [vmem:[#allocation5 + $0x398] sm:$0xff]
    %v163 = vld [vmem:[#allocation5 + $0x3a0] sm:$0xff]
    %v164 = vld [vmem:[#allocation5 + $0x3a8] sm:$0xff]
    %v165 = vld [vmem:[#allocation5 + $0x3b0] sm:$0xff]
    %v166 = vld [vmem:[#allocation5 + $0x3b8] sm:$0xff]
    %v167 = vld [vmem:[#allocation5 + $0x3c0] sm:$0xff]
    %v168 = vld [vmem:[#allocation5 + $0x3c8] sm:$0xff]
    %v169 = vld [vmem:[#allocation5 + $0x3d0] sm:$0xff]
    %v170 = vld [vmem:[#allocation5 + $0x3d8] sm:$0xff]
    %v171 = vld [vmem:[#allocation5 + $0x3e0] sm:$0xff]
    %v172 = vld [vmem:[#allocation5 + $0x3e8] sm:$0xff]
    %v173 = vld [vmem:[#allocation5 + $0x3f0] sm:$0xff]
    %v174 = vld [vmem:[#allocation5 + $0x3f8] sm:$0xff]
    %v175 = vld [vmem:[#allocation5 + $0x400] sm:$0xff]
    %v176 = vld [vmem:[#allocation5 + $0x408] sm:$0xff]
    %v177 = vld [vmem:[#allocation5 + $0x410] sm:$0xff]
    %v178 = vld [vmem:[#allocation5 + $0x418] sm:$0xff]
    %v179 = vld [vmem:[#allocation5 + $0x420] sm:$0xff]
    %v180 = vld [vmem:[#allocation5 + $0x428] sm:$0xff]
    %v181 = vld [vmem:[#allocation5 + $0x430] sm:$0xff]
    %v182 = vld [vmem:[#allocation5 + $0x438] sm:$0xff]
    %v183 = vld [vmem:[#allocation5 + $0x440] sm:$0xff]
    %v184 = vld [vmem:[#allocation5 + $0x448] sm:$0xff]
    %v185 = vld [vmem:[#allocation5 + $0x450] sm:$0xff]
    %v186 = vld [vmem:[#allocation5 + $0x458] sm:$0xff]
    %v187 = vld [vmem:[#allocation5 + $0x460] sm:$0xff]
    %v188 = vld [vmem:[#allocation5 + $0x468] sm:$0xff]
    %v189 = vld [vmem:[#allocation5 + $0x470] sm:$0xff]
    %v190 = vld [vmem:[#allocation5 + $0x478] sm:$0xff]
    %v191 = vld [vmem:[#allocation5 + $0x480] sm:$0xff]
    %v192 = vld [vmem:[#allocation5 + $0x488] sm:$0xff]
    %v193 = vld [vmem:[#allocation5 + $0x490] sm:$0xff]
    %v194 = vld [vmem:[#allocation5 + $0x498] sm:$0xff]
    %v195 = vld [vmem:[#allocation5 + $0x4a0] sm:$0xff]
    %v196 = vld [vmem:[#allocation5 + $0x4a8] sm:$0xff]
    %v197 = vld [vmem:[#allocation5 + $0x4b0] sm:$0xff]
    %v198 = vld [vmem:[#allocation5 + $0x4b8] sm:$0xff]
    %v199 = vld [vmem:[#allocation5 + $0x4c0] sm:$0xff]
    %v200 = vld [vmem:[#allocation5 + $0x4c8] sm:$0xff]
    %v201 = vld [vmem:[#allocation5 + $0x4d0] sm:$0xff]
    %v202 = vld [vmem:[#allocation5 + $0x4d8] sm:$0xff]
    %v203 = vld [vmem:[#allocation5 + $0x4e0] sm:$0xff]
    %v204 = vld [vmem:[#allocation5 + $0x4e8] sm:$0xff]
    %v205 = vld [vmem:[#allocation5 + $0x4f0] sm:$0xff]
    %v206 = vld [vmem:[#allocation5 + $0x4f8] sm:$0xff]
    %v207 = vld [vmem:[#allocation5 + $0x500] sm:$0xff]
    %v208 = vld [vmem:[#allocation5 + $0x508] sm:$0xff]
    %v209 = vld [vmem:[#allocation5 + $0x510] sm:$0xff]
    %v210 = vld [vmem:[#allocation5 + $0x518] sm:$0xff]
    %v211 = vld [vmem:[#allocation5 + $0x520] sm:$0xff]
    %v212 = vld [vmem:[#allocation5 + $0x528] sm:$0xff]
    %v213 = vld [vmem:[#allocation5 + $0x530] sm:$0xff]
    %v214 = vld [vmem:[#allocation5 + $0x538] sm:$0xff]
    %v215 = vld [vmem:[#allocation5 + $0x540] sm:$0xff]
    %v216 = vld [vmem:[#allocation5 + $0x548] sm:$0xff]
    %v217 = vld [vmem:[#allocation5 + $0x550] sm:$0xff]
    %v218 = vld [vmem:[#allocation5 + $0x558] sm:$0xff]
    %v219 = vld [vmem:[#allocation5 + $0x560] sm:$0xff]
    %v220 = vld [vmem:[#allocation5 + $0x568] sm:$0xff]
    %v221 = vld [vmem:[#allocation5 + $0x570] sm:$0xff]
    %v222 = vld [vmem:[#allocation5 + $0x578] sm:$0xff]
    %v223 = vld [vmem:[#allocation5 + $0x580] sm:$0xff]
    %v224 = vld [vmem:[#allocation5 + $0x588] sm:$0xff]
    %v225 = vld [vmem:[#allocation5 + $0x590] sm:$0xff]
    %v226 = vld [vmem:[#allocation5 + $0x598] sm:$0xff]
    %v227 = vld [vmem:[#allocation5 + $0x5a0] sm:$0xff]
    %v228 = vld [vmem:[#allocation5 + $0x5a8] sm:$0xff]
    %v229 = vld [vmem:[#allocation5 + $0x5b0] sm:$0xff]
    %v230 = vld [vmem:[#allocation5 + $0x5b8] sm:$0xff]
    %v231 = vld [vmem:[#allocation5 + $0x5c0] sm:$0xff]
    %v232 = vld [vmem:[#allocation5 + $0x5c8] sm:$0xff]
    %v233 = vld [vmem:[#allocation5 + $0x5d0] sm:$0xff]
    %v234 = vld [vmem:[#allocation5 + $0x5d8] sm:$0xff]
    %v235 = vld [vmem:[#allocation5 + $0x5e0] sm:$0xff]
    %v236 = vld [vmem:[#allocation5 + $0x5e8] sm:$0xff]
    %v237 = vld [vmem:[#allocation5 + $0x5f0] sm:$0xff]
    %v238 = vld [vmem:[#allocation5 + $0x5f8] sm:$0xff]
    %v239 = vld [vmem:[#allocation5 + $0x600] sm:$0xff]
    %v240 = vld [vmem:[#allocation5 + $0x608] sm:$0xff]
    %v241 = vld [vmem:[#allocation5 + $0x610] sm:$0xff]
    %v242 = vld [vmem:[#allocation5 + $0x618] sm:$0xff]
    %v243 = vld [vmem:[#allocation5 + $0x620] sm:$0xff]
    %v244 = vld [vmem:[#allocation5 + $0x628] sm:$0xff]
    %v245 = vld [vmem:[#allocation5 + $0x630] sm:$0xff]
    %v246 = vld [vmem:[#allocation5 + $0x638] sm:$0xff]
    %v247 = vld [vmem:[#allocation5 + $0x640] sm:$0xff]
    %v248 = vld [vmem:[#allocation5 + $0x648] sm:$0xff]
    %v249 = vld [vmem:[#allocation5 + $0x650] sm:$0xff]
    %v250 = vld [vmem:[#allocation5 + $0x658] sm:$0xff]
    %v251 = vld [vmem:[#allocation5 + $0x660] sm:$0xff]
    %v252 = vld [vmem:[#allocation5 + $0x668] sm:$0xff]
    %v253 = vld [vmem:[#allocation5 + $0x670] sm:$0xff]
    %v254 = vld [vmem:[#allocation5 + $0x678] sm:$0xff]
    %v255 = vld [vmem:[#allocation5 + $0x680] sm:$0xff]
    %v256 = vld [vmem:[#allocation5 + $0x688] sm:$0xff]
    %v257 = vld [vmem:[#allocation5 + $0x690] sm:$0xff]
    %v258 = vld [vmem:[#allocation5 + $0x698] sm:$0xff]
    %v259 = vld [vmem:[#allocation5 + $0x6a0] sm:$0xff]
    %v260 = vld [vmem:[#allocation5 + $0x6a8] sm:$0xff]
    %v261 = vld [vmem:[#allocation5 + $0x6b0] sm:$0xff]
    %v262 = vld [vmem:[#allocation5 + $0x6b8] sm:$0xff]
    %v263 = vld [vmem:[#allocation5 + $0x6c0] sm:$0xff]
    %v264 = vld [vmem:[#allocation5 + $0x6c8] sm:$0xff]
    %v265 = vld [vmem:[#allocation5 + $0x6d0] sm:$0xff]
    %v266 = vld [vmem:[#allocation5 + $0x6d8] sm:$0xff]
    %v267 = vld [vmem:[#allocation5 + $0x6e0] sm:$0xff]
    %v268 = vld [vmem:[#allocation5 + $0x6e8] sm:$0xff]
    %v269 = vld [vmem:[#allocation5 + $0x6f0] sm:$0xff]
    %v270 = vld [vmem:[#allocation5 + $0x6f8] sm:$0xff]
    %v271 = vld [vmem:[#allocation5 + $0x700] sm:$0xff]
    %v272 = vld [vmem:[#allocation5 + $0x708] sm:$0xff]
    %v273 = vld [vmem:[#allocation5 + $0x710] sm:$0xff]
    %v274 = vld [vmem:[#allocation5 + $0x718] sm:$0xff]
    %v275 = vld [vmem:[#allocation5 + $0x720] sm:$0xff]
    %v276 = vld [vmem:[#allocation5 + $0x728] sm:$0xff]
    %v277 = vld [vmem:[#allocation5 + $0x730] sm:$0xff]
    %v278 = vld [vmem:[#allocation5 + $0x738] sm:$0xff]
    %v279 = vld [vmem:[#allocation5 + $0x740] sm:$0xff]
    %v280 = vld [vmem:[#allocation5 + $0x748] sm:$0xff]
    %v281 = vld [vmem:[#allocation5 + $0x750] sm:$0xff]
    %v282 = vld [vmem:[#allocation5 + $0x758] sm:$0xff]
    %v283 = vld [vmem:[#allocation5 + $0x760] sm:$0xff]
    %v284 = vld [vmem:[#allocation5 + $0x768] sm:$0xff]
    %v285 = vld [vmem:[#allocation5 + $0x770] sm:$0xff]
    %v286 = vld [vmem:[#allocation5 + $0x778] sm:$0xff]
    %v287 = vld [vmem:[#allocation5 + $0x780] sm:$0xff]
    %v288 = vld [vmem:[#allocation5 + $0x788] sm:$0xff]
    %v289 = vld [vmem:[#allocation5 + $0x790] sm:$0xff]
    %v290 = vld [vmem:[#allocation5 + $0x798] sm:$0xff]
    %v291 = vld [vmem:[#allocation5 + $0x7a0] sm:$0xff]
    %v292 = vld [vmem:[#allocation5 + $0x7a8] sm:$0xff]
    %v293 = vld [vmem:[#allocation5 + $0x7b0] sm:$0xff]
    %v294 = vld [vmem:[#allocation5 + $0x7b8] sm:$0xff]
    %v295 = vld [vmem:[#allocation5 + $0x7c0] sm:$0xff]
    %v296 = vld [vmem:[#allocation5 + $0x7c8] sm:$0xff]
    %v297 = vld [vmem:[#allocation5 + $0x7d0] sm:$0xff]
    %v298 = vld [vmem:[#allocation5 + $0x7d8] sm:$0xff]
    %v299 = vld [vmem:[#allocation5 + $0x7e0] sm:$0xff]
    %v300 = vld [vmem:[#allocation5 + $0x7e8] sm:$0xff]
    %v301 = vld [vmem:[#allocation5 + $0x7f0] sm:$0xff]
    %v302 = vld [vmem:[#allocation5 + $0x7f8] sm:$0xff]
    %v303 = vld [vmem:[#allocation5 + $0x800] sm:$0xff]
    %v304 = vld [vmem:[#allocation5 + $0x808] sm:$0xff]
    %v305 = vld [vmem:[#allocation5 + $0x810] sm:$0xff]
    %v306 = vld [vmem:[#allocation5 + $0x818] sm:$0xff]
    %v307 = vld [vmem:[#allocation5 + $0x820] sm:$0xff]
    %v308 = vld [vmem:[#allocation5 + $0x828] sm:$0xff]
    %v309 = vld [vmem:[#allocation5 + $0x830] sm:$0xff]
    %v310 = vld [vmem:[#allocation5 + $0x838] sm:$0xff]
    %v311 = vld [vmem:[#allocation5 + $0x840] sm:$0xff]
    %v312 = vld [vmem:[#allocation5 + $0x848] sm:$0xff]
    %v313 = vld [vmem:[#allocation5 + $0x850] sm:$0xff]
    %v314 = vld [vmem:[#allocation5 + $0x858] sm:$0xff]
    %v315 = vld [vmem:[#allocation5 + $0x860] sm:$0xff]
    %v316 = vld [vmem:[#allocation5 + $0x868] sm:$0xff]
    %v317 = vld [vmem:[#allocation5 + $0x870] sm:$0xff]
    %v318 = vld [vmem:[#allocation5 + $0x878] sm:$0xff]
    %v319 = vld [vmem:[#allocation5 + $0x880] sm:$0xff]
    %v320 = vld [vmem:[#allocation5 + $0x888] sm:$0xff]
    %v321 = vld [vmem:[#allocation5 + $0x890] sm:$0xff]
    %v322 = vld [vmem:[#allocation5 + $0x898] sm:$0xff]
    %v323 = vld [vmem:[#allocation5 + $0x8a0] sm:$0xff]
    %v324 = vld [vmem:[#allocation5 + $0x8a8] sm:$0xff]
    %v325 = vld [vmem:[#allocation5 + $0x8b0] sm:$0xff]
    %v326 = vld [vmem:[#allocation5 + $0x8b8] sm:$0xff]
    %v327 = vld [vmem:[#allocation5 + $0x8c0] sm:$0xff]
    %v328 = vld [vmem:[#allocation5 + $0x8c8] sm:$0xff]
    %v329 = vld [vmem:[#allocation5 + $0x8d0] sm:$0xff]
    %v330 = vld [vmem:[#allocation5 + $0x8d8] sm:$0xff]
    %v331 = vld [vmem:[#allocation5 + $0x8e0] sm:$0xff]
    %v332 = vld [vmem:[#allocation5 + $0x8e8] sm:$0xff]
    %v333 = vld [vmem:[#allocation5 + $0x8f0] sm:$0xff]
    %v334 = vld [vmem:[#allocation5 + $0x8f8] sm:$0xff]
    %335 = vmatprep.subr.mxu0 %v48
    %336 = vmatpush1.msra.mxu0 %v47
    %337 = vmatprep.subr.mxu0 %v57
    %338 = vmatpush1.msra.mxu0 %v56
    %339 = vmatprep.subr.mxu0 %v66
    %340 = vmatpush1.msra.mxu0 %v65
    %341 = vmatprep.subr.mxu0 %v75
    %342 = vmatpush1.msra.mxu0 %v74
    %343 = vmatprep.subr.mxu0 %v84
    %344 = vmatpush1.msra.mxu0 %v83
    %345 = vmatprep.subr.mxu0 %v93
    %346 = vmatpush1.msra.mxu0 %v92
    %347 = vmatprep.subr.mxu0 %v102
    %348 = vmatpush1.msra.mxu0 %v101
    %349 = vmatprep.subr.mxu0 %v111
    %350 = vmatpush1.msra.mxu0 %v110
    %351 = vmatprep.subr.mxu0 %v120
    %352 = vmatpush1.msra.mxu0 %v119
    %353 = vmatprep.subr.mxu0 %v129
    %354 = vmatpush1.msra.mxu0 %v128
    %355 = vmatprep.subr.mxu0 %v138
    %356 = vmatpush1.msra.mxu0 %v137
    %357 = vmatprep.subr.mxu0 %v147
    %358 = vmatpush1.msra.mxu0 %v146
    %359 = vmatprep.subr.mxu0 %v156
    %360 = vmatpush1.msra.mxu0 %v155
    %361 = vmatprep.subr.mxu0 %v165
    %362 = vmatpush1.msra.mxu0 %v164
    %363 = vmatprep.subr.mxu0 %v174
    %364 = vmatpush1.msra.mxu0 %v173
    %365 = vmatprep.subr.mxu0 %v183
    %366 = vmatpush1.msra.mxu0 %v182
    %367 = vmatprep.subr.mxu0 %v192
    %368 = vmatpush1.msra.mxu0 %v191
    %369 = vmatprep.subr.mxu0 %v201
    %370 = vmatpush1.msra.mxu0 %v200
    %371 = vmatprep.subr.mxu0 %v210
    %372 = vmatpush1.msra.mxu0 %v209
    %373 = vmatprep.subr.mxu0 %v219
    %374 = vmatpush1.msra.mxu0 %v218
    %375 = vmatprep.subr.mxu0 %v228
    %376 = vmatpush1.msra.mxu0 %v227
    %377 = vmatprep.subr.mxu0 %v237
    %378 = vmatpush1.msra.mxu0 %v236
    %379 = vmatprep.subr.mxu0 %v246
    %380 = vmatpush1.msra.mxu0 %v245
    %381 = vmatprep.subr.mxu0 %v255
    %382 = vmatpush1.msra.mxu0 %v254
    %383 = vmatprep.subr.mxu0 %v264
    %384 = vmatpush1.msra.mxu0 %v263
    %385 = vmatprep.subr.mxu0 %v273
    %386 = vmatpush1.msra.mxu0 %v272
    %387 = vmatprep.subr.mxu0 %v282
    %388 = vmatpush1.msra.mxu0 %v281
    %389 = vmatprep.subr.mxu0 %v291
    %390 = vmatpush1.msra.mxu0 %v290
    %391 = vmatprep.subr.mxu0 %v300
    %392 = vmatpush1.msra.mxu0 %v299
    %393 = vmatprep.subr.mxu0 %v309
    %394 = vmatpush1.msra.mxu0 %v308
    %395 = vmatprep.subr.mxu0 %v318
    %396 = vmatpush1.msra.mxu0 %v317
    %397 = vmatprep.subr.mxu0 %v327
    %398 = vmatpush1.msra.mxu0 %v326
    %399 = vmatprep.mubr.f32.mxu0 %v44
    %400 = vmatmul.mubr.f32.gmra.mrb[0].mxu0 %v43
    %v401 = vpop.f32.mrb[0].mxu0
    %v402 = vadd.f32 0.0, %v401
    %v403 = vpop.f32.mrb[0].mxu0
    %v404 = vadd.f32 0.0, %v403
    %405 = vmatprep.mubr.f32.mxu0 %v46
    %406 = vmatmul.mubr.f32.gmra.mrb[0].mxu0 %v45
    %v407 = vpop.f32.mrb[0].mxu0
    %v408 = vadd.f32 0.0, %v407
    %v409 = vpop.f32.mrb[0].mxu0
    %v410 = vadd.f32 0.0, %v409
    %411 = vdwg.mxu0
    %412 = vmatprep.subr.mxu0 %v50
    %413 = vmatpush1.msra.mxu0 %v49
    %414 = vmatprep.subr.mxu0 %v59
    %415 = vmatpush1.msra.mxu0 %v58
    %416 = vmatprep.subr.mxu0 %v68
    %417 = vmatpush1.msra.mxu0 %v67
    %418 = vmatprep.subr.mxu0 %v77
    %419 = vmatpush1.msra.mxu0 %v76
    %420 = vmatprep.subr.mxu0 %v86
    %421 = vmatpush1.msra.mxu0 %v85
    %422 = vmatprep.subr.mxu0 %v95
    %423 = vmatpush1.msra.mxu0 %v94
    %424 = vmatprep.subr.mxu0 %v104
    %425 = vmatpush1.msra.mxu0 %v103
    %426 = vmatprep.subr.mxu0 %v113
    %427 = vmatpush1.msra.mxu0 %v112
    %428 = vmatprep.subr.mxu0 %v122
    %429 = vmatpush1.msra.mxu0 %v121
    %430 = vmatprep.subr.mxu0 %v131
    %431 = vmatpush1.msra.mxu0 %v130
    %432 = vmatprep.subr.mxu0 %v140
    %433 = vmatpush1.msra.mxu0 %v139
    %434 = vmatprep.subr.mxu0 %v149
    %435 = vmatpush1.msra.mxu0 %v148
    %436 = vmatprep.subr.mxu0 %v158
    %437 = vmatpush1.msra.mxu0 %v157
    %438 = vmatprep.subr.mxu0 %v167
    %439 = vmatpush1.msra.mxu0 %v166
    %440 = vmatprep.subr.mxu0 %v176
    %441 = vmatpush1.msra.mxu0 %v175
    %442 = vmatprep.subr.mxu0 %v185
    %443 = vmatpush1.msra.mxu0 %v184
    %444 = vmatprep.subr.mxu0 %v194
    %445 = vmatpush1.msra.mxu0 %v193
    %446 = vmatprep.subr.mxu0 %v203
    %447 = vmatpush1.msra.mxu0 %v202
    %448 = vmatprep.subr.mxu0 %v212
    %449 = vmatpush1.msra.mxu0 %v211
    %450 = vmatprep.subr.mxu0 %v221
    %451 = vmatpush1.msra.mxu0 %v220
    %452 = vmatprep.subr.mxu0 %v230
    %453 = vmatpush1.msra.mxu0 %v229
    %454 = vmatprep.subr.mxu0 %v239
    %455 = vmatpush1.msra.mxu0 %v238
    %456 = vmatprep.subr.mxu0 %v248
    %457 = vmatpush1.msra.mxu0 %v247
    %458 = vmatprep.subr.mxu0 %v257
    %459 = vmatpush1.msra.mxu0 %v256
    %460 = vmatprep.subr.mxu0 %v266
    %461 = vmatpush1.msra.mxu0 %v265
    %462 = vmatprep.subr.mxu0 %v275
    %463 = vmatpush1.msra.mxu0 %v274
    %464 = vmatprep.subr.mxu0 %v284
    %465 = vmatpush1.msra.mxu0 %v283
    %466 = vmatprep.subr.mxu0 %v293
    %467 = vmatpush1.msra.mxu0 %v292
    %468 = vmatprep.subr.mxu0 %v302
    %469 = vmatpush1.msra.mxu0 %v301
    %470 = vmatprep.subr.mxu0 %v311
    %471 = vmatpush1.msra.mxu0 %v310
    %472 = vmatprep.subr.mxu0 %v320
    %473 = vmatpush1.msra.mxu0 %v319
    %474 = vmatprep.subr.mxu0 %v329
    %475 = vmatpush1.msra.mxu0 %v328
    %476 = vmatprep.mubr.f32.mxu0 %v44
    %477 = vmatmul.mubr.f32.gmra.mrb[0].mxu0 %v43
    %v478 = vpop.f32.mrb[0].mxu0
    %v479 = vadd.f32 0.0, %v478
    %v480 = vpop.f32.mrb[0].mxu0
    %v481 = vadd.f32 0.0, %v480
    %482 = vmatprep.mubr.f32.mxu0 %v46
    %483 = vmatmul.mubr.f32.gmra.mrb[0].mxu0 %v45
    %v484 = vpop.f32.mrb[0].mxu0
    %v485 = vadd.f32 0.0, %v484
    %v486 = vpop.f32.mrb[0].mxu0
    %v487 = vadd.f32 0.0, %v486
    %488 = vdwg.mxu0
    %489 = vmatprep.subr.mxu0 %v52
    %490 = vmatpush1.msra.mxu0 %v51
    %491 = vmatprep.subr.mxu0 %v61
    %492 = vmatpush1.msra.mxu0 %v60
    %493 = vmatprep.subr.mxu0 %v70
    %494 = vmatpush1.msra.mxu0 %v69
    %495 = vmatprep.subr.mxu0 %v79
    %496 = vmatpush1.msra.mxu0 %v78
    %497 = vmatprep.subr.mxu0 %v88
    %498 = vmatpush1.msra.mxu0 %v87
    %499 = vmatprep.subr.mxu0 %v97
    %500 = vmatpush1.msra.mxu0 %v96
    %501 = vmatprep.subr.mxu0 %v106
    %502 = vmatpush1.msra.mxu0 %v105
    %503 = vmatprep.subr.mxu0 %v115
    %504 = vmatpush1.msra.mxu0 %v114
    %505 = vmatprep.subr.mxu0 %v124
    %506 = vmatpush1.msra.mxu0 %v123
    %507 = vmatprep.subr.mxu0 %v133
    %508 = vmatpush1.msra.mxu0 %v132
    %509 = vmatprep.subr.mxu0 %v142
    %510 = vmatpush1.msra.mxu0 %v141
    %511 = vmatprep.subr.mxu0 %v151
    %512 = vmatpush1.msra.mxu0 %v150
    %513 = vmatprep.subr.mxu0 %v160
    %514 = vmatpush1.msra.mxu0 %v159
    %515 = vmatprep.subr.mxu0 %v169
    %516 = vmatpush1.msra.mxu0 %v168
    %517 = vmatprep.subr.mxu0 %v178
    %518 = vmatpush1.msra.mxu0 %v177
    %519 = vmatprep.subr.mxu0 %v187
    %520 = vmatpush1.msra.mxu0 %v186
    %521 = vmatprep.subr.mxu0 %v196
    %522 = vmatpush1.msra.mxu0 %v195
    %523 = vmatprep.subr.mxu0 %v205
    %524 = vmatpush1.msra.mxu0 %v204
    %525 = vmatprep.subr.mxu0 %v214
    %526 = vmatpush1.msra.mxu0 %v213
    %527 = vmatprep.subr.mxu0 %v223
    %528 = vmatpush1.msra.mxu0 %v222
    %529 = vmatprep.subr.mxu0 %v232
    %530 = vmatpush1.msra.mxu0 %v231
    %531 = vmatprep.subr.mxu0 %v241
    %532 = vmatpush1.msra.mxu0 %v240
    %533 = vmatprep.subr.mxu0 %v250
    %534 = vmatpush1.msra.mxu0 %v249
    %535 = vmatprep.subr.mxu0 %v259
    %536 = vmatpush1.msra.mxu0 %v258
    %537 = vmatprep.subr.mxu0 %v268
    %538 = vmatpush1.msra.mxu0 %v267
    %539 = vmatprep.subr.mxu0 %v277
    %540 = vmatpush1.msra.mxu0 %v276
    %541 = vmatprep.subr.mxu0 %v286
    %542 = vmatpush1.msra.mxu0 %v285
    %543 = vmatprep.subr.mxu0 %v295
    %544 = vmatpush1.msra.mxu0 %v294
    %545 = vmatprep.subr.mxu0 %v304
    %546 = vmatpush1.msra.mxu0 %v303
    %547 = vmatprep.subr.mxu0 %v313
    %548 = vmatpush1.msra.mxu0 %v312
    %549 = vmatprep.subr.mxu0 %v322
    %550 = vmatpush1.msra.mxu0 %v321
    %551 = vmatprep.subr.mxu0 %v331
    %552 = vmatpush1.msra.mxu0 %v330
    %553 = vmatprep.mubr.f32.mxu0 %v44
    %554 = vmatmul.mubr.f32.gmra.mrb[0].mxu0 %v43
    %v555 = vpop.f32.mrb[0].mxu0
    %v556 = vadd.f32 0.0, %v555
    %v557 = vpop.f32.mrb[0].mxu0
    %v558 = vadd.f32 0.0, %v557
    %559 = vmatprep.mubr.f32.mxu0 %v46
    %560 = vmatmul.mubr.f32.gmra.mrb[0].mxu0 %v45
    %v561 = vpop.f32.mrb[0].mxu0
    %v562 = vadd.f32 0.0, %v561
    %v563 = vpop.f32.mrb[0].mxu0
    %v564 = vadd.f32 0.0, %v563
    %565 = vdwg.mxu0
    %566 = vmatprep.subr.mxu0 %v54
    %567 = vmatpush1.msra.mxu0 %v53
    %568 = vmatprep.subr.mxu0 %v63
    %569 = vmatpush1.msra.mxu0 %v62
    %570 = vmatprep.subr.mxu0 %v72
    %571 = vmatpush1.msra.mxu0 %v71
    %572 = vmatprep.subr.mxu0 %v81
    %573 = vmatpush1.msra.mxu0 %v80
    %574 = vmatprep.subr.mxu0 %v90
    %575 = vmatpush1.msra.mxu0 %v89
    %576 = vmatprep.subr.mxu0 %v99
    %577 = vmatpush1.msra.mxu0 %v98
    %578 = vmatprep.subr.mxu0 %v108
    %579 = vmatpush1.msra.mxu0 %v107
    %580 = vmatprep.subr.mxu0 %v117
    %581 = vmatpush1.msra.mxu0 %v116
    %582 = vmatprep.subr.mxu0 %v126
    %583 = vmatpush1.msra.mxu0 %v125
    %584 = vmatprep.subr.mxu0 %v135
    %585 = vmatpush1.msra.mxu0 %v134
    %586 = vmatprep.subr.mxu0 %v144
    %587 = vmatpush1.msra.mxu0 %v143
    %588 = vmatprep.subr.mxu0 %v153
    %589 = vmatpush1.msra.mxu0 %v152
    %590 = vmatprep.subr.mxu0 %v162
    %591 = vmatpush1.msra.mxu0 %v161
    %592 = vmatprep.subr.mxu0 %v171
    %593 = vmatpush1.msra.mxu0 %v170
    %594 = vmatprep.subr.mxu0 %v180
    %595 = vmatpush1.msra.mxu0 %v179
    %596 = vmatprep.subr.mxu0 %v189
    %597 = vmatpush1.msra.mxu0 %v188
    %598 = vmatprep.subr.mxu0 %v198
    %599 = vmatpush1.msra.mxu0 %v197
    %600 = vmatprep.subr.mxu0 %v207
    %601 = vmatpush1.msra.mxu0 %v206
    %602 = vmatprep.subr.mxu0 %v216
    %603 = vmatpush1.msra.mxu0 %v215
    %604 = vmatprep.subr.mxu0 %v225
    %605 = vmatpush1.msra.mxu0 %v224
    %606 = vmatprep.subr.mxu0 %v234
    %607 = vmatpush1.msra.mxu0 %v233
    %608 = vmatprep.subr.mxu0 %v243
    %609 = vmatpush1.msra.mxu0 %v242
    %610 = vmatprep.subr.mxu0 %v252
    %611 = vmatpush1.msra.mxu0 %v251
    %612 = vmatprep.subr.mxu0 %v261
    %613 = vmatpush1.msra.mxu0 %v260
    %614 = vmatprep.subr.mxu0 %v270
    %615 = vmatpush1.msra.mxu0 %v269
    %616 = vmatprep.subr.mxu0 %v279
    %617 = vmatpush1.msra.mxu0 %v278
    %618 = vmatprep.subr.mxu0 %v288
    %619 = vmatpush1.msra.mxu0 %v287
    %620 = vmatprep.subr.mxu0 %v297
    %621 = vmatpush1.msra.mxu0 %v296
    %622 = vmatprep.subr.mxu0 %v306
    %623 = vmatpush1.msra.mxu0 %v305
    %624 = vmatprep.subr.mxu0 %v315
    %625 = vmatpush1.msra.mxu0 %v314
    %626 = vmatprep.subr.mxu0 %v324
    %627 = vmatpush1.msra.mxu0 %v323
    %628 = vmatprep.subr.mxu0 %v333
    %629 = vmatpush1.msra.mxu0 %v332
    %630 = vmatprep.mubr.f32.mxu0 %v44
    %631 = vmatmul.mubr.f32.gmra.mrb[0].mxu0 %v43
    %v632 = vpop.f32.mrb[0].mxu0
    %v633 = vadd.f32 0.0, %v632
    %v634 = vpop.f32.mrb[0].mxu0
    %v635 = vadd.f32 0.0, %v634
    %636 = vmatprep.mubr.f32.mxu0 %v46
    %637 = vmatmul.mubr.f32.gmra.mrb[0].mxu0 %v45
    %v638 = vpop.f32.mrb[0].mxu0
    %v639 = vadd.f32 0.0, %v638
    %v640 = vpop.f32.mrb[0].mxu0
    %v641 = vadd.f32 0.0, %v640
    %642 = vdwg.mxu0
    %643 = vmatprep.subr.mxu0 0.0
    %644 = vmatpush1.msra.mxu0 %v55
    %645 = vmatprep.subr.mxu0 0.0
    %646 = vmatpush1.msra.mxu0 %v64
    %647 = vmatprep.subr.mxu0 0.0
    %648 = vmatpush1.msra.mxu0 %v73
    %649 = vmatprep.subr.mxu0 0.0
    %650 = vmatpush1.msra.mxu0 %v82
    %651 = vmatprep.subr.mxu0 0.0
    %652 = vmatpush1.msra.mxu0 %v91
    %653 = vmatprep.subr.mxu0 0.0
    %654 = vmatpush1.msra.mxu0 %v100
    %655 = vmatprep.subr.mxu0 0.0
    %656 = vmatpush1.msra.mxu0 %v109
    %657 = vmatprep.subr.mxu0 0.0
    %658 = vmatpush1.msra.mxu0 %v118
    %659 = vmatprep.subr.mxu0 0.0
    %660 = vmatpush1.msra.mxu0 %v127
    %661 = vmatprep.subr.mxu0 0.0
    %662 = vmatpush1.msra.mxu0 %v136
    %663 = vmatprep.subr.mxu0 0.0
    %664 = vmatpush1.msra.mxu0 %v145
    %665 = vmatprep.subr.mxu0 0.0
    %666 = vmatpush1.msra.mxu0 %v154
    %667 = vmatprep.subr.mxu0 0.0
    %668 = vmatpush1.msra.mxu0 %v163
    %669 = vmatprep.subr.mxu0 0.0
    %670 = vmatpush1.msra.mxu0 %v172
    %671 = vmatprep.subr.mxu0 0.0
    %672 = vmatpush1.msra.mxu0 %v181
    %673 = vmatprep.subr.mxu0 0.0
    %674 = vmatpush1.msra.mxu0 %v190
    %675 = vmatprep.subr.mxu0 0.0
    %676 = vmatpush1.msra.mxu0 %v199
    %677 = vmatprep.subr.mxu0 0.0
    %678 = vmatpush1.msra.mxu0 %v208
    %679 = vmatprep.subr.mxu0 0.0
    %680 = vmatpush1.msra.mxu0 %v217
    %681 = vmatprep.subr.mxu0 0.0
    %682 = vmatpush1.msra.mxu0 %v226
    %683 = vmatprep.subr.mxu0 0.0
    %684 = vmatpush1.msra.mxu0 %v235
    %685 = vmatprep.subr.mxu0 0.0
    %686 = vmatpush1.msra.mxu0 %v244
    %687 = vmatprep.subr.mxu0 0.0
    %688 = vmatpush1.msra.mxu0 %v253
    %689 = vmatprep.subr.mxu0 0.0
    %690 = vmatpush1.msra.mxu0 %v262
    %691 = vmatprep.subr.mxu0 0.0
    %692 = vmatpush1.msra.mxu0 %v271
    %693 = vmatprep.subr.mxu0 0.0
    %694 = vmatpush1.msra.mxu0 %v280
    %695 = vmatprep.subr.mxu0 0.0
    %696 = vmatpush1.msra.mxu0 %v289
    %697 = vmatprep.subr.mxu0 0.0
    %698 = vmatpush1.msra.mxu0 %v298
    %699 = vmatprep.subr.mxu0 0.0
    %700 = vmatpush1.msra.mxu0 %v307
    %701 = vmatprep.subr.mxu0 0.0
    %702 = vmatpush1.msra.mxu0 %v316
    %703 = vmatprep.subr.mxu0 0.0
    %704 = vmatpush1.msra.mxu0 %v325
    %705 = vmatprep.subr.mxu0 0.0
    %706 = vmatpush1.msra.mxu0 %v334
    %707 = vmatprep.mubr.f32.mxu0 %v44
    %708 = vmatmul.mubr.f32.gmra.mrb[0].mxu0 %v43
    %v709 = vpop.f32.mrb[0].mxu0
    %v710 = vadd.f32 0.0, %v709
    %v711 = vpop.f32.mrb[0].mxu0
    %712 = vmatprep.mubr.f32.mxu0 %v46
    %713 = vmatmul.mubr.f32.gmra.mrb[0].mxu0 %v45
    %v714 = vpop.f32.mrb[0].mxu0
    %v715 = vadd.f32 0.0, %v714
    %v716 = vpop.f32.mrb[0].mxu0
    %717 = vdwg.mxu0
    %718 = vst [vmem:[#allocation7] sm:$0xff] %v710
    %719 = vst [vmem:[#allocation7 + $0x8] sm:$0xff] %v715
    %v720 = vadd.f32 %v402, %v404
    %v721 = vadd.f32 %v720, %v479
    %v722 = vadd.f32 %v721, %v481
    %v723 = vadd.f32 %v722, %v556
    %v724 = vadd.f32 %v723, %v558
    %v725 = vadd.f32 %v724, %v633
    %v726 = vadd.f32 %v725, %v635
    %727 = vadd.xlane.f32.xlu0 %v726
    %v728 = vpop.xlane.xlu0 %727
    %v729 = vadd.f32 %v408, %v410
    %v730 = vadd.f32 %v729, %v485
    %v731 = vadd.f32 %v730, %v487
    %v732 = vadd.f32 %v731, %v562
    %v733 = vadd.f32 %v732, %v564
    %v734 = vadd.f32 %v733, %v639
    %v735 = vadd.f32 %v734, %v641
    %736 = vadd.xlane.f32.xlu0 %v735
    %v737 = vpop.xlane.xlu0 %736
    %v738 = vadd.f32 %v728, %v737
    %v739 = vmul.f32 %v738, 0.00048828125
    %v740 = vsub.f32 %v402, %v739
    %v741 = vsub.f32 %v404, %v739
    %v742 = vsub.f32 %v479, %v739
    %v743 = vsub.f32 %v481, %v739
    %v744 = vsub.f32 %v556, %v739
    %v745 = vsub.f32 %v558, %v739
    %v746 = vsub.f32 %v633, %v739
    %v747 = vsub.f32 %v635, %v739
    %v748 = vsub.f32 %v408, %v739
    %v749 = vsub.f32 %v410, %v739
    %v750 = vsub.f32 %v485, %v739
    %v751 = vsub.f32 %v487, %v739
    %v752 = vsub.f32 %v562, %v739
    %v753 = vsub.f32 %v564, %v739
    %v754 = vsub.f32 %v639, %v739
    %v755 = vsub.f32 %v641, %v739
    %v756 = vmul.f32 %v740, %v740
    %v757 = vmul.f32 %v741, %v741
    %v758 = vmul.f32 %v742, %v742
    %v759 = vmul.f32 %v743, %v743
    %v760 = vmul.f32 %v744, %v744
    %v761 = vmul.f32 %v745, %v745
    %v762 = vmul.f32 %v746, %v746
    %v763 = vmul.f32 %v747, %v747
    %v764 = vmul.f32 %v748, %v748
    %v765 = vmul.f32 %v749, %v749
    %v766 = vmul.f32 %v750, %v750
    %v767 = vmul.f32 %v751, %v751
    %v768 = vmul.f32 %v752, %v752
    %v769 = vmul.f32 %v753, %v753
    %v770 = vmul.f32 %v754, %v754
    %v771 = vmul.f32 %v755, %v755
    %v772 = vadd.f32 %v756, %v757
    %v773 = vadd.f32 %v772, %v758
    %v774 = vadd.f32 %v773, %v759
    %v775 = vadd.f32 %v774, %v760
    %v776 = vadd.f32 %v775, %v761
    %v777 = vadd.f32 %v776, %v762
    %v778 = vadd.f32 %v777, %v763
    %779 = vadd.xlane.f32.xlu0 %v778
    %v780 = vpop.xlane.xlu0 %779
    %v781 = vadd.f32 %v764, %v765
    %v782 = vadd.f32 %v781, %v766
    %v783 = vadd.f32 %v782, %v767
    %v784 = vadd.f32 %v783, %v768
    %v785 = vadd.f32 %v784, %v769
    %v786 = vadd.f32 %v785, %v770
    %v787 = vadd.f32 %v786, %v771
    %788 = vadd.xlane.f32.xlu0 %v787
    %v789 = vpop.xlane.xlu0 %788
    %v790 = vadd.f32 %v780, %v789
    %v791 = vmul.f32 %v790, 0.00048828125
    %v792 = vrsqrt.pop %v791
    %v793 = vmul.f32 %v740, %v792
    %v794 = vmul.f32 %v741, %v792
    %v795 = vmul.f32 %v742, %v792
    %v796 = vmul.f32 %v743, %v792
    %v797 = vmul.f32 %v744, %v792
    %v798 = vmul.f32 %v745, %v792
    %v799 = vmul.f32 %v746, %v792
    %v800 = vmul.f32 %v747, %v792
    %v801 = vmul.f32 %v748, %v792
    %v802 = vmul.f32 %v749, %v792
    %v803 = vmul.f32 %v750, %v792
    %v804 = vmul.f32 %v751, %v792
    %v805 = vmul.f32 %v752, %v792
    %v806 = vmul.f32 %v753, %v792
    %v807 = vmul.f32 %v754, %v792
    %v808 = vmul.f32 %v755, %v792
    %809 = vst [vmem:[#allocation8] sm:$0xff] %v793
    %810 = vst [vmem:[#allocation8 + $0x8] sm:$0xff] %v794
    %811 = vst [vmem:[#allocation8 + $0x10] sm:$0xff] %v795
    %812 = vst [vmem:[#allocation8 + $0x18] sm:$0xff] %v796
    %813 = vst [vmem:[#allocation8 + $0x20] sm:$0xff] %v797
    %814 = vst [vmem:[#allocation8 + $0x28] sm:$0xff] %v798
    %815 = vst [vmem:[#allocation8 + $0x30] sm:$0xff] %v799
    %816 = vst [vmem:[#allocation8 + $0x38] sm:$0xff] %v800
    %817 = vst [vmem:[#allocation8 + $0x40] sm:$0xff] %v801
    %818 = vst [vmem:[#allocation8 + $0x48] sm:$0xff] %v802
    %819 = vst [vmem:[#allocation8 + $0x50] sm:$0xff] %v803
    %820 = vst [vmem:[#allocation8 + $0x58] sm:$0xff] %v804
    %821 = vst [vmem:[#allocation8 + $0x60] sm:$0xff] %v805
    %822 = vst [vmem:[#allocation8 + $0x68] sm:$0xff] %v806
    %823 = vst [vmem:[#allocation8 + $0x70] sm:$0xff] %v807
    %824 = vst [vmem:[#allocation8 + $0x78] sm:$0xff] %v808
    // Predicated region
    $region18: #{tpu_custom_call.1} parent=1 // pred_check
      _
    $region19: #{tpu_custom_call.1} parent=1 // pred_check_branch
      %826 = sbr.rel (0) target = $region21
    $region20: #{tpu_custom_call.1} parent=1 // pred_region
      %s828 = ssub.s32 256, 256
      %829 = vsyncadd [#allocation4], %s828
      %s830 = sshll.u32 [#allocation7], 4
      %s831 = int_to_ptr.vmem [resolvable:$true] %s830
      %836 = dma.vmem_to_hbm [thread:$0]  %s831, 256, %s2, [#allocation4], 128, 128, 8
    $region21: #{tpu_custom_call.1} parent=1 // pred_fallthru
      _
    // Predicated region
    $region22: #{tpu_custom_call.1} parent=1 // pred_check
      _
    $region23: #{tpu_custom_call.1} parent=1 // pred_check_branch
      %838 = sbr.rel (0) target = $region25
    $region24: #{tpu_custom_call.1} parent=1 // pred_region
      %s840 = ssub.s32 2048, 2048
      %841 = vsyncadd [#allocation9], %s840
      %s842 = sshll.u32 [#allocation8], 4
      %s843 = int_to_ptr.vmem [resolvable:$true] %s842
      %848 = dma.vmem_to_hbm [thread:$0]  %s843, 2048, %s3, [#allocation9], 1024, 1024, 64
    $region25: #{tpu_custom_call.1} parent=1 // pred_fallthru
      _
    // Predicated region
    $region26: #{tpu_custom_call.1} parent=1 // pred_check
      _
    $region27: #{tpu_custom_call.1} parent=1 // pred_check_branch
      %850 = sbr.rel (0) target = $region29
    $region28: #{tpu_custom_call.1} parent=1 // pred_region
      %851 = dma.done [#allocation4], 256
    $region29: #{tpu_custom_call.1} parent=1 // pred_fallthru
      _
    // Predicated region
    $region30: #{tpu_custom_call.1} parent=1 // pred_check
      _
    $region31: #{tpu_custom_call.1} parent=1 // pred_check_branch
      %853 = sbr.rel (0) target = $region33
    $region32: #{tpu_custom_call.1} parent=1 // pred_region
      %854 = dma.done [#allocation9], 2048
    $region33: #{tpu_custom_call.1} parent=1 // pred_fallthru
      _
    %855 = vsyncpa [#allocation3], 1
    %856 = vsyncpa [#allocation6], 1
    %857 = vsyncpa [#allocation4], 1
    %858 = vsyncpa [#allocation9], 1

// kernel: tpu_custom_call.1
$region0: #{tpu_custom_call.1}
  #allocation0 [shape = 'u32[]', space=smem, size = 0x4, offset = 0x4, fixed_abs, tag = 'smem constant byte address 0x4 - core index']
  #allocation1 [shape = 'u32[144,128]{1,0:T(1,128)}', space=vmem, size = 0x12000, scoped, tag = 'internal scratch']
  %s0 = inlined_call_operand.hbm [shape: f32[2,8,256], index: 0, kind: input, shape index: {}]
  %s1 = inlined_call_operand.hbm [shape: f32[256,1152], index: 1, kind: input, shape index: {}]
  %s2 = inlined_call_operand.hbm [shape: f32[2,8,128], index: 2, kind: output, shape index: {0}]
  %s3 = inlined_call_operand.hbm [shape: f32[2,8,1024], index: 3, kind: output, shape index: {1}]
  %4 = xla_tuple %s2, %s3
  %s5 = sld [smem:[#allocation0]]
  $region34: #{tpu_custom_call.1} parent=0
    _
  %s7 = ssub.s32 1, %s5
  %s8 = scalar_select 0, %s7, %s5
  $region1: #{tpu_custom_call.1} parent=0
    #allocation2 [shape = 'u8[16384]{0}', space=vmem, size = 0x4000, scoped, tag = 'input window, operand 0, single buffered']
    #allocation3 [shape = 's32[1]{0}', space=sflag, size = 0x4, scoped, tag = 'scoped memory for tpu_custom_call.1']
    #allocation4 [shape = 's32[1]{0}', space=sflag, size = 0x4, scoped, tag = 'scoped memory for tpu_custom_call.1']
    #allocation5 [shape = 'u8[1179648]{0}', space=vmem, size = 0x120000, scoped, tag = 'input window, operand 1, single buffered']
    #allocation6 [shape = 's32[1]{0}', space=sflag, size = 0x4, scoped, tag = 'scoped memory for tpu_custom_call.1']
    #allocation7 [shape = 'u8[8192]{0}', space=vmem, size = 0x2000, scoped, tag = 'output window, operand 0, single buffered']
    #allocation8 [shape = 'u8[65536]{0}', space=vmem, size = 0x10000, scoped, tag = 'output window, operand 1, single buffered']
    #allocation9 [shape = 's32[1]{0}', space=sflag, size = 0x4, scoped, tag = 'scoped memory for tpu_custom_call.1']
    %9 = vsyncpa [#allocation3], 0
    %10 = vsyncpa [#allocation6], 0
    %11 = vsyncpa [#allocation4], 0
    %12 = vsyncpa [#allocation9], 0
    // Predicated region
    $region2: #{tpu_custom_call.1} parent=1 // pred_check
      _
    $region3: #{tpu_custom_call.1} parent=1 // pred_check_branch
      %14 = sbr.rel (0) target = $region5
    $region4: #{tpu_custom_call.1} parent=1 // pred_region
      %s16 = ssub.s32 512, 512
      %17 = vsyncadd [#allocation3], %s16
      %s18 = sshll.u32 [#allocation2], 4
      %s19 = int_to_ptr.vmem [resolvable:$true] %s18
      %24 = dma.hbm_to_vmem [thread:$0]  %s0, 512, %s19, [#allocation3], 256, 256, 16
    $region5: #{tpu_custom_call.1} parent=1 // pred_fallthru
      _
    // Predicated region
    $region6: #{tpu_custom_call.1} parent=1 // pred_check
      _
    $region7: #{tpu_custom_call.1} parent=1 // pred_check_branch
      %26 = sbr.rel (0) target = $region9
    $region8: #{tpu_custom_call.1} parent=1 // pred_region
      %s28 = ssub.s32 36864, 36864
      %29 = vsyncadd [#allocation6], %s28
      %s30 = sshll.u32 [#allocation5], 4
      %s31 = int_to_ptr.vmem [resolvable:$true] %s30
      %36 = dma.hbm_to_vmem [thread:$0]  %s1, 36864, %s31, [#allocation6], 1152, 1152, 72
    $region9: #{tpu_custom_call.1} parent=1 // pred_fallthru
      _
    // Predicated region
    $region10: #{tpu_custom_call.1} parent=1 // pred_check
      _
    $region11: #{tpu_custom_call.1} parent=1 // pred_check_branch
      %38 = sbr.rel (0) target = $region13
    $region12: #{tpu_custom_call.1} parent=1 // pred_region
      %39 = dma.done [#allocation3], 512
    $region13: #{tpu_custom_call.1} parent=1 // pred_fallthru
      _
    // Predicated region
    $region14: #{tpu_custom_call.1} parent=1 // pred_check
      _
    $region15: #{tpu_custom_call.1} parent=1 // pred_check_branch
      %41 = sbr.rel (0) target = $region17
    $region16: #{tpu_custom_call.1} parent=1 // pred_region
      %42 = dma.done [#allocation6], 36864
    $region17: #{tpu_custom_call.1} parent=1 // pred_fallthru
      _
    %v43 = vld [vmem:[#allocation2] sm:$0xff]
    %v44 = vld [vmem:[#allocation2 + $0x8] sm:$0xff]
    %v45 = vld [vmem:[#allocation2 + $0x10] sm:$0xff]
    %v46 = vld [vmem:[#allocation2 + $0x18] sm:$0xff]
    %v47 = vld [vmem:[#allocation5] sm:$0xff]
    %v48 = vld [vmem:[#allocation5 + $0x8] sm:$0xff]
    %v49 = vld [vmem:[#allocation5 + $0x10] sm:$0xff]
    %v50 = vld [vmem:[#allocation5 + $0x18] sm:$0xff]
    %v51 = vld [vmem:[#allocation5 + $0x20] sm:$0xff]
    %v52 = vld [vmem:[#allocation5 + $0x28] sm:$0xff]
    %v53 = vld [vmem:[#allocation5 + $0x30] sm:$0xff]
    %v54 = vld [vmem:[#allocation5 + $0x38] sm:$0xff]
    %v55 = vld [vmem:[#allocation5 + $0x40] sm:$0xff]
    %v56 = vld [vmem:[#allocation5 + $0x48] sm:$0xff]
    %v57 = vld [vmem:[#allocation5 + $0x50] sm:$0xff]
    %v58 = vld [vmem:[#allocation5 + $0x58] sm:$0xff]
    %v59 = vld [vmem:[#allocation5 + $0x60] sm:$0xff]
    %v60 = vld [vmem:[#allocation5 + $0x68] sm:$0xff]
    %v61 = vld [vmem:[#allocation5 + $0x70] sm:$0xff]
    %v62 = vld [vmem:[#allocation5 + $0x78] sm:$0xff]
    %v63 = vld [vmem:[#allocation5 + $0x80] sm:$0xff]
    %v64 = vld [vmem:[#allocation5 + $0x88] sm:$0xff]
    %v65 = vld [vmem:[#allocation5 + $0x90] sm:$0xff]
    %v66 = vld [vmem:[#allocation5 + $0x98] sm:$0xff]
    %v67 = vld [vmem:[#allocation5 + $0xa0] sm:$0xff]
    %v68 = vld [vmem:[#allocation5 + $0xa8] sm:$0xff]
    %v69 = vld [vmem:[#allocation5 + $0xb0] sm:$0xff]
    %v70 = vld [vmem:[#allocation5 + $0xb8] sm:$0xff]
    %v71 = vld [vmem:[#allocation5 + $0xc0] sm:$0xff]
    %v72 = vld [vmem:[#allocation5 + $0xc8] sm:$0xff]
    %v73 = vld [vmem:[#allocation5 + $0xd0] sm:$0xff]
    %v74 = vld [vmem:[#allocation5 + $0xd8] sm:$0xff]
    %v75 = vld [vmem:[#allocation5 + $0xe0] sm:$0xff]
    %v76 = vld [vmem:[#allocation5 + $0xe8] sm:$0xff]
    %v77 = vld [vmem:[#allocation5 + $0xf0] sm:$0xff]
    %v78 = vld [vmem:[#allocation5 + $0xf8] sm:$0xff]
    %v79 = vld [vmem:[#allocation5 + $0x100] sm:$0xff]
    %v80 = vld [vmem:[#allocation5 + $0x108] sm:$0xff]
    %v81 = vld [vmem:[#allocation5 + $0x110] sm:$0xff]
    %v82 = vld [vmem:[#allocation5 + $0x118] sm:$0xff]
    %v83 = vld [vmem:[#allocation5 + $0x120] sm:$0xff]
    %v84 = vld [vmem:[#allocation5 + $0x128] sm:$0xff]
    %v85 = vld [vmem:[#allocation5 + $0x130] sm:$0xff]
    %v86 = vld [vmem:[#allocation5 + $0x138] sm:$0xff]
    %v87 = vld [vmem:[#allocation5 + $0x140] sm:$0xff]
    %v88 = vld [vmem:[#allocation5 + $0x148] sm:$0xff]
    %v89 = vld [vmem:[#allocation5 + $0x150] sm:$0xff]
    %v90 = vld [vmem:[#allocation5 + $0x158] sm:$0xff]
    %v91 = vld [vmem:[#allocation5 + $0x160] sm:$0xff]
    %v92 = vld [vmem:[#allocation5 + $0x168] sm:$0xff]
    %v93 = vld [vmem:[#allocation5 + $0x170] sm:$0xff]
    %v94 = vld [vmem:[#allocation5 + $0x178] sm:$0xff]
    %v95 = vld [vmem:[#allocation5 + $0x180] sm:$0xff]
    %v96 = vld [vmem:[#allocation5 + $0x188] sm:$0xff]
    %v97 = vld [vmem:[#allocation5 + $0x190] sm:$0xff]
    %v98 = vld [vmem:[#allocation5 + $0x198] sm:$0xff]
    %v99 = vld [vmem:[#allocation5 + $0x1a0] sm:$0xff]
    %v100 = vld [vmem:[#allocation5 + $0x1a8] sm:$0xff]
    %v101 = vld [vmem:[#allocation5 + $0x1b0] sm:$0xff]
    %v102 = vld [vmem:[#allocation5 + $0x1b8] sm:$0xff]
    %v103 = vld [vmem:[#allocation5 + $0x1c0] sm:$0xff]
    %v104 = vld [vmem:[#allocation5 + $0x1c8] sm:$0xff]
    %v105 = vld [vmem:[#allocation5 + $0x1d0] sm:$0xff]
    %v106 = vld [vmem:[#allocation5 + $0x1d8] sm:$0xff]
    %v107 = vld [vmem:[#allocation5 + $0x1e0] sm:$0xff]
    %v108 = vld [vmem:[#allocation5 + $0x1e8] sm:$0xff]
    %v109 = vld [vmem:[#allocation5 + $0x1f0] sm:$0xff]
    %v110 = vld [vmem:[#allocation5 + $0x1f8] sm:$0xff]
    %v111 = vld [vmem:[#allocation5 + $0x200] sm:$0xff]
    %v112 = vld [vmem:[#allocation5 + $0x208] sm:$0xff]
    %v113 = vld [vmem:[#allocation5 + $0x210] sm:$0xff]
    %v114 = vld [vmem:[#allocation5 + $0x218] sm:$0xff]
    %v115 = vld [vmem:[#allocation5 + $0x220] sm:$0xff]
    %v116 = vld [vmem:[#allocation5 + $0x228] sm:$0xff]
    %v117 = vld [vmem:[#allocation5 + $0x230] sm:$0xff]
    %v118 = vld [vmem:[#allocation5 + $0x238] sm:$0xff]
    %v119 = vld [vmem:[#allocation5 + $0x240] sm:$0xff]
    %v120 = vld [vmem:[#allocation5 + $0x248] sm:$0xff]
    %v121 = vld [vmem:[#allocation5 + $0x250] sm:$0xff]
    %v122 = vld [vmem:[#allocation5 + $0x258] sm:$0xff]
    %v123 = vld [vmem:[#allocation5 + $0x260] sm:$0xff]
    %v124 = vld [vmem:[#allocation5 + $0x268] sm:$0xff]
    %v125 = vld [vmem:[#allocation5 + $0x270] sm:$0xff]
    %v126 = vld [vmem:[#allocation5 + $0x278] sm:$0xff]
    %v127 = vld [vmem:[#allocation5 + $0x280] sm:$0xff]
    %v128 = vld [vmem:[#allocation5 + $0x288] sm:$0xff]
    %v129 = vld [vmem:[#allocation5 + $0x290] sm:$0xff]
    %v130 = vld [vmem:[#allocation5 + $0x298] sm:$0xff]
    %v131 = vld [vmem:[#allocation5 + $0x2a0] sm:$0xff]
    %v132 = vld [vmem:[#allocation5 + $0x2a8] sm:$0xff]
    %v133 = vld [vmem:[#allocation5 + $0x2b0] sm:$0xff]
    %v134 = vld [vmem:[#allocation5 + $0x2b8] sm:$0xff]
    %v135 = vld [vmem:[#allocation5 + $0x2c0] sm:$0xff]
    %v136 = vld [vmem:[#allocation5 + $0x2c8] sm:$0xff]
    %v137 = vld [vmem:[#allocation5 + $0x2d0] sm:$0xff]
    %v138 = vld [vmem:[#allocation5 + $0x2d8] sm:$0xff]
    %v139 = vld [vmem:[#allocation5 + $0x2e0] sm:$0xff]
    %v140 = vld [vmem:[#allocation5 + $0x2e8] sm:$0xff]
    %v141 = vld [vmem:[#allocation5 + $0x2f0] sm:$0xff]
    %v142 = vld [vmem:[#allocation5 + $0x2f8] sm:$0xff]
    %v143 = vld [vmem:[#allocation5 + $0x300] sm:$0xff]
    %v144 = vld [vmem:[#allocation5 + $0x308] sm:$0xff]
    %v145 = vld [vmem:[#allocation5 + $0x310] sm:$0xff]
    %v146 = vld [vmem:[#allocation5 + $0x318] sm:$0xff]
    %v147 = vld [vmem:[#allocation5 + $0x320] sm:$0xff]
    %v148 = vld [vmem:[#allocation5 + $0x328] sm:$0xff]
    %v149 = vld [vmem:[#allocation5 + $0x330] sm:$0xff]
    %v150 = vld [vmem:[#allocation5 + $0x338] sm:$0xff]
    %v151 = vld [vmem:[#allocation5 + $0x340] sm:$0xff]
    %v152 = vld [vmem:[#allocation5 + $0x348] sm:$0xff]
    %v153 = vld [vmem:[#allocation5 + $0x350] sm:$0xff]
    %v154 = vld [vmem:[#allocation5 + $0x358] sm:$0xff]
    %v155 = vld [vmem:[#allocation5 + $0x360] sm:$0xff]
    %v156 = vld [vmem:[#allocation5 + $0x368] sm:$0xff]
    %v157 = vld [vmem:[#allocation5 + $0x370] sm:$0xff]
    %v158 = vld [vmem:[#allocation5 + $0x378] sm:$0xff]
    %v159 = vld [vmem:[#allocation5 + $0x380] sm:$0xff]
    %v160 = vld [vmem:[#allocation5 + $0x388] sm:$0xff]
    %v161 = vld [vmem:[#allocation5 + $0x390] sm:$0xff]
    %v162 = vld [vmem:[#allocation5 + $0x398] sm:$0xff]
    %v163 = vld [vmem:[#allocation5 + $0x3a0] sm:$0xff]
    %v164 = vld [vmem:[#allocation5 + $0x3a8] sm:$0xff]
    %v165 = vld [vmem:[#allocation5 + $0x3b0] sm:$0xff]
    %v166 = vld [vmem:[#allocation5 + $0x3b8] sm:$0xff]
    %v167 = vld [vmem:[#allocation5 + $0x3c0] sm:$0xff]
    %v168 = vld [vmem:[#allocation5 + $0x3c8] sm:$0xff]
    %v169 = vld [vmem:[#allocation5 + $0x3d0] sm:$0xff]
    %v170 = vld [vmem:[#allocation5 + $0x3d8] sm:$0xff]
    %v171 = vld [vmem:[#allocation5 + $0x3e0] sm:$0xff]
    %v172 = vld [vmem:[#allocation5 + $0x3e8] sm:$0xff]
    %v173 = vld [vmem:[#allocation5 + $0x3f0] sm:$0xff]
    %v174 = vld [vmem:[#allocation5 + $0x3f8] sm:$0xff]
    %v175 = vld [vmem:[#allocation5 + $0x400] sm:$0xff]
    %v176 = vld [vmem:[#allocation5 + $0x408] sm:$0xff]
    %v177 = vld [vmem:[#allocation5 + $0x410] sm:$0xff]
    %v178 = vld [vmem:[#allocation5 + $0x418] sm:$0xff]
    %v179 = vld [vmem:[#allocation5 + $0x420] sm:$0xff]
    %v180 = vld [vmem:[#allocation5 + $0x428] sm:$0xff]
    %v181 = vld [vmem:[#allocation5 + $0x430] sm:$0xff]
    %v182 = vld [vmem:[#allocation5 + $0x438] sm:$0xff]
    %v183 = vld [vmem:[#allocation5 + $0x440] sm:$0xff]
    %v184 = vld [vmem:[#allocation5 + $0x448] sm:$0xff]
    %v185 = vld [vmem:[#allocation5 + $0x450] sm:$0xff]
    %v186 = vld [vmem:[#allocation5 + $0x458] sm:$0xff]
    %v187 = vld [vmem:[#allocation5 + $0x460] sm:$0xff]
    %v188 = vld [vmem:[#allocation5 + $0x468] sm:$0xff]
    %v189 = vld [vmem:[#allocation5 + $0x470] sm:$0xff]
    %v190 = vld [vmem:[#allocation5 + $0x478] sm:$0xff]
    %v191 = vld [vmem:[#allocation5 + $0x480] sm:$0xff]
    %v192 = vld [vmem:[#allocation5 + $0x488] sm:$0xff]
    %v193 = vld [vmem:[#allocation5 + $0x490] sm:$0xff]
    %v194 = vld [vmem:[#allocation5 + $0x498] sm:$0xff]
    %v195 = vld [vmem:[#allocation5 + $0x4a0] sm:$0xff]
    %v196 = vld [vmem:[#allocation5 + $0x4a8] sm:$0xff]
    %v197 = vld [vmem:[#allocation5 + $0x4b0] sm:$0xff]
    %v198 = vld [vmem:[#allocation5 + $0x4b8] sm:$0xff]
    %v199 = vld [vmem:[#allocation5 + $0x4c0] sm:$0xff]
    %v200 = vld [vmem:[#allocation5 + $0x4c8] sm:$0xff]
    %v201 = vld [vmem:[#allocation5 + $0x4d0] sm:$0xff]
    %v202 = vld [vmem:[#allocation5 + $0x4d8] sm:$0xff]
    %v203 = vld [vmem:[#allocation5 + $0x4e0] sm:$0xff]
    %v204 = vld [vmem:[#allocation5 + $0x4e8] sm:$0xff]
    %v205 = vld [vmem:[#allocation5 + $0x4f0] sm:$0xff]
    %v206 = vld [vmem:[#allocation5 + $0x4f8] sm:$0xff]
    %v207 = vld [vmem:[#allocation5 + $0x500] sm:$0xff]
    %v208 = vld [vmem:[#allocation5 + $0x508] sm:$0xff]
    %v209 = vld [vmem:[#allocation5 + $0x510] sm:$0xff]
    %v210 = vld [vmem:[#allocation5 + $0x518] sm:$0xff]
    %v211 = vld [vmem:[#allocation5 + $0x520] sm:$0xff]
    %v212 = vld [vmem:[#allocation5 + $0x528] sm:$0xff]
    %v213 = vld [vmem:[#allocation5 + $0x530] sm:$0xff]
    %v214 = vld [vmem:[#allocation5 + $0x538] sm:$0xff]
    %v215 = vld [vmem:[#allocation5 + $0x540] sm:$0xff]
    %v216 = vld [vmem:[#allocation5 + $0x548] sm:$0xff]
    %v217 = vld [vmem:[#allocation5 + $0x550] sm:$0xff]
    %v218 = vld [vmem:[#allocation5 + $0x558] sm:$0xff]
    %v219 = vld [vmem:[#allocation5 + $0x560] sm:$0xff]
    %v220 = vld [vmem:[#allocation5 + $0x568] sm:$0xff]
    %v221 = vld [vmem:[#allocation5 + $0x570] sm:$0xff]
    %v222 = vld [vmem:[#allocation5 + $0x578] sm:$0xff]
    %v223 = vld [vmem:[#allocation5 + $0x580] sm:$0xff]
    %v224 = vld [vmem:[#allocation5 + $0x588] sm:$0xff]
    %v225 = vld [vmem:[#allocation5 + $0x590] sm:$0xff]
    %v226 = vld [vmem:[#allocation5 + $0x598] sm:$0xff]
    %v227 = vld [vmem:[#allocation5 + $0x5a0] sm:$0xff]
    %v228 = vld [vmem:[#allocation5 + $0x5a8] sm:$0xff]
    %v229 = vld [vmem:[#allocation5 + $0x5b0] sm:$0xff]
    %v230 = vld [vmem:[#allocation5 + $0x5b8] sm:$0xff]
    %v231 = vld [vmem:[#allocation5 + $0x5c0] sm:$0xff]
    %v232 = vld [vmem:[#allocation5 + $0x5c8] sm:$0xff]
    %v233 = vld [vmem:[#allocation5 + $0x5d0] sm:$0xff]
    %v234 = vld [vmem:[#allocation5 + $0x5d8] sm:$0xff]
    %v235 = vld [vmem:[#allocation5 + $0x5e0] sm:$0xff]
    %v236 = vld [vmem:[#allocation5 + $0x5e8] sm:$0xff]
    %v237 = vld [vmem:[#allocation5 + $0x5f0] sm:$0xff]
    %v238 = vld [vmem:[#allocation5 + $0x5f8] sm:$0xff]
    %v239 = vld [vmem:[#allocation5 + $0x600] sm:$0xff]
    %v240 = vld [vmem:[#allocation5 + $0x608] sm:$0xff]
    %v241 = vld [vmem:[#allocation5 + $0x610] sm:$0xff]
    %v242 = vld [vmem:[#allocation5 + $0x618] sm:$0xff]
    %v243 = vld [vmem:[#allocation5 + $0x620] sm:$0xff]
    %v244 = vld [vmem:[#allocation5 + $0x628] sm:$0xff]
    %v245 = vld [vmem:[#allocation5 + $0x630] sm:$0xff]
    %v246 = vld [vmem:[#allocation5 + $0x638] sm:$0xff]
    %v247 = vld [vmem:[#allocation5 + $0x640] sm:$0xff]
    %v248 = vld [vmem:[#allocation5 + $0x648] sm:$0xff]
    %v249 = vld [vmem:[#allocation5 + $0x650] sm:$0xff]
    %v250 = vld [vmem:[#allocation5 + $0x658] sm:$0xff]
    %v251 = vld [vmem:[#allocation5 + $0x660] sm:$0xff]
    %v252 = vld [vmem:[#allocation5 + $0x668] sm:$0xff]
    %v253 = vld [vmem:[#allocation5 + $0x670] sm:$0xff]
    %v254 = vld [vmem:[#allocation5 + $0x678] sm:$0xff]
    %v255 = vld [vmem:[#allocation5 + $0x680] sm:$0xff]
    %v256 = vld [vmem:[#allocation5 + $0x688] sm:$0xff]
    %v257 = vld [vmem:[#allocation5 + $0x690] sm:$0xff]
    %v258 = vld [vmem:[#allocation5 + $0x698] sm:$0xff]
    %v259 = vld [vmem:[#allocation5 + $0x6a0] sm:$0xff]
    %v260 = vld [vmem:[#allocation5 + $0x6a8] sm:$0xff]
    %v261 = vld [vmem:[#allocation5 + $0x6b0] sm:$0xff]
    %v262 = vld [vmem:[#allocation5 + $0x6b8] sm:$0xff]
    %v263 = vld [vmem:[#allocation5 + $0x6c0] sm:$0xff]
    %v264 = vld [vmem:[#allocation5 + $0x6c8] sm:$0xff]
    %v265 = vld [vmem:[#allocation5 + $0x6d0] sm:$0xff]
    %v266 = vld [vmem:[#allocation5 + $0x6d8] sm:$0xff]
    %v267 = vld [vmem:[#allocation5 + $0x6e0] sm:$0xff]
    %v268 = vld [vmem:[#allocation5 + $0x6e8] sm:$0xff]
    %v269 = vld [vmem:[#allocation5 + $0x6f0] sm:$0xff]
    %v270 = vld [vmem:[#allocation5 + $0x6f8] sm:$0xff]
    %v271 = vld [vmem:[#allocation5 + $0x700] sm:$0xff]
    %v272 = vld [vmem:[#allocation5 + $0x708] sm:$0xff]
    %v273 = vld [vmem:[#allocation5 + $0x710] sm:$0xff]
    %v274 = vld [vmem:[#allocation5 + $0x718] sm:$0xff]
    %v275 = vld [vmem:[#allocation5 + $0x720] sm:$0xff]
    %v276 = vld [vmem:[#allocation5 + $0x728] sm:$0xff]
    %v277 = vld [vmem:[#allocation5 + $0x730] sm:$0xff]
    %v278 = vld [vmem:[#allocation5 + $0x738] sm:$0xff]
    %v279 = vld [vmem:[#allocation5 + $0x740] sm:$0xff]
    %v280 = vld [vmem:[#allocation5 + $0x748] sm:$0xff]
    %v281 = vld [vmem:[#allocation5 + $0x750] sm:$0xff]
    %v282 = vld [vmem:[#allocation5 + $0x758] sm:$0xff]
    %v283 = vld [vmem:[#allocation5 + $0x760] sm:$0xff]
    %v284 = vld [vmem:[#allocation5 + $0x768] sm:$0xff]
    %v285 = vld [vmem:[#allocation5 + $0x770] sm:$0xff]
    %v286 = vld [vmem:[#allocation5 + $0x778] sm:$0xff]
    %v287 = vld [vmem:[#allocation5 + $0x780] sm:$0xff]
    %v288 = vld [vmem:[#allocation5 + $0x788] sm:$0xff]
    %v289 = vld [vmem:[#allocation5 + $0x790] sm:$0xff]
    %v290 = vld [vmem:[#allocation5 + $0x798] sm:$0xff]
    %v291 = vld [vmem:[#allocation5 + $0x7a0] sm:$0xff]
    %v292 = vld [vmem:[#allocation5 + $0x7a8] sm:$0xff]
    %v293 = vld [vmem:[#allocation5 + $0x7b0] sm:$0xff]
    %v294 = vld [vmem:[#allocation5 + $0x7b8] sm:$0xff]
    %v295 = vld [vmem:[#allocation5 + $0x7c0] sm:$0xff]
    %v296 = vld [vmem:[#allocation5 + $0x7c8] sm:$0xff]
    %v297 = vld [vmem:[#allocation5 + $0x7d0] sm:$0xff]
    %v298 = vld [vmem:[#allocation5 + $0x7d8] sm:$0xff]
    %v299 = vld [vmem:[#allocation5 + $0x7e0] sm:$0xff]
    %v300 = vld [vmem:[#allocation5 + $0x7e8] sm:$0xff]
    %v301 = vld [vmem:[#allocation5 + $0x7f0] sm:$0xff]
    %v302 = vld [vmem:[#allocation5 + $0x7f8] sm:$0xff]
    %v303 = vld [vmem:[#allocation5 + $0x800] sm:$0xff]
    %v304 = vld [vmem:[#allocation5 + $0x808] sm:$0xff]
    %v305 = vld [vmem:[#allocation5 + $0x810] sm:$0xff]
    %v306 = vld [vmem:[#allocation5 + $0x818] sm:$0xff]
    %v307 = vld [vmem:[#allocation5 + $0x820] sm:$0xff]
    %v308 = vld [vmem:[#allocation5 + $0x828] sm:$0xff]
    %v309 = vld [vmem:[#allocation5 + $0x830] sm:$0xff]
    %v310 = vld [vmem:[#allocation5 + $0x838] sm:$0xff]
    %v311 = vld [vmem:[#allocation5 + $0x840] sm:$0xff]
    %v312 = vld [vmem:[#allocation5 + $0x848] sm:$0xff]
    %v313 = vld [vmem:[#allocation5 + $0x850] sm:$0xff]
    %v314 = vld [vmem:[#allocation5 + $0x858] sm:$0xff]
    %v315 = vld [vmem:[#allocation5 + $0x860] sm:$0xff]
    %v316 = vld [vmem:[#allocation5 + $0x868] sm:$0xff]
    %v317 = vld [vmem:[#allocation5 + $0x870] sm:$0xff]
    %v318 = vld [vmem:[#allocation5 + $0x878] sm:$0xff]
    %v319 = vld [vmem:[#allocation5 + $0x880] sm:$0xff]
    %v320 = vld [vmem:[#allocation5 + $0x888] sm:$0xff]
    %v321 = vld [vmem:[#allocation5 + $0x890] sm:$0xff]
    %v322 = vld [vmem:[#allocation5 + $0x898] sm:$0xff]
    %v323 = vld [vmem:[#allocation5 + $0x8a0] sm:$0xff]
    %v324 = vld [vmem:[#allocation5 + $0x8a8] sm:$0xff]
    %v325 = vld [vmem:[#allocation5 + $0x8b0] sm:$0xff]
    %v326 = vld [vmem:[#allocation5 + $0x8b8] sm:$0xff]
    %v327 = vld [vmem:[#allocation5 + $0x8c0] sm:$0xff]
    %v328 = vld [vmem:[#allocation5 + $0x8c8] sm:$0xff]
    %v329 = vld [vmem:[#allocation5 + $0x8d0] sm:$0xff]
    %v330 = vld [vmem:[#allocation5 + $0x8d8] sm:$0xff]
    %v331 = vld [vmem:[#allocation5 + $0x8e0] sm:$0xff]
    %v332 = vld [vmem:[#allocation5 + $0x8e8] sm:$0xff]
    %v333 = vld [vmem:[#allocation5 + $0x8f0] sm:$0xff]
    %v334 = vld [vmem:[#allocation5 + $0x8f8] sm:$0xff]
    %335 = vmatprep.subr.mxu0 %v48
    %336 = vmatpush1.msra.mxu0 %v47
    %337 = vmatprep.subr.mxu0 %v57
    %338 = vmatpush1.msra.mxu0 %v56
    %339 = vmatprep.subr.mxu0 %v66
    %340 = vmatpush1.msra.mxu0 %v65
    %341 = vmatprep.subr.mxu0 %v75
    %342 = vmatpush1.msra.mxu0 %v74
    %343 = vmatprep.subr.mxu0 %v84
    %344 = vmatpush1.msra.mxu0 %v83
    %345 = vmatprep.subr.mxu0 %v93
    %346 = vmatpush1.msra.mxu0 %v92
    %347 = vmatprep.subr.mxu0 %v102
    %348 = vmatpush1.msra.mxu0 %v101
    %349 = vmatprep.subr.mxu0 %v111
    %350 = vmatpush1.msra.mxu0 %v110
    %351 = vmatprep.subr.mxu0 %v120
    %352 = vmatpush1.msra.mxu0 %v119
    %353 = vmatprep.subr.mxu0 %v129
    %354 = vmatpush1.msra.mxu0 %v128
    %355 = vmatprep.subr.mxu0 %v138
    %356 = vmatpush1.msra.mxu0 %v137
    %357 = vmatprep.subr.mxu0 %v147
    %358 = vmatpush1.msra.mxu0 %v146
    %359 = vmatprep.subr.mxu0 %v156
    %360 = vmatpush1.msra.mxu0 %v155
    %361 = vmatprep.subr.mxu0 %v165
    %362 = vmatpush1.msra.mxu0 %v164
    %363 = vmatprep.subr.mxu0 %v174
    %364 = vmatpush1.msra.mxu0 %v173
    %365 = vmatprep.subr.mxu0 %v183
    %366 = vmatpush1.msra.mxu0 %v182
    %367 = vmatprep.subr.mxu0 %v192
    %368 = vmatpush1.msra.mxu0 %v191
    %369 = vmatprep.subr.mxu0 %v201
    %370 = vmatpush1.msra.mxu0 %v200
    %371 = vmatprep.subr.mxu0 %v210
    %372 = vmatpush1.msra.mxu0 %v209
    %373 = vmatprep.subr.mxu0 %v219
    %374 = vmatpush1.msra.mxu0 %v218
    %375 = vmatprep.subr.mxu0 %v228
    %376 = vmatpush1.msra.mxu0 %v227
    %377 = vmatprep.subr.mxu0 %v237
    %378 = vmatpush1.msra.mxu0 %v236
    %379 = vmatprep.subr.mxu0 %v246
    %380 = vmatpush1.msra.mxu0 %v245
    %381 = vmatprep.subr.mxu0 %v255
    %382 = vmatpush1.msra.mxu0 %v254
    %383 = vmatprep.subr.mxu0 %v264
    %384 = vmatpush1.msra.mxu0 %v263
    %385 = vmatprep.subr.mxu0 %v273
    %386 = vmatpush1.msra.mxu0 %v272
    %387 = vmatprep.subr.mxu0 %v282
    %388 = vmatpush1.msra.mxu0 %v281
    %389 = vmatprep.subr.mxu0 %v291
    %390 = vmatpush1.msra.mxu0 %v290
    %391 = vmatprep.subr.mxu0 %v300
    %392 = vmatpush1.msra.mxu0 %v299
    %393 = vmatprep.subr.mxu0 %v309
    %394 = vmatpush1.msra.mxu0 %v308
    %395 = vmatprep.subr.mxu0 %v318
    %396 = vmatpush1.msra.mxu0 %v317
    %397 = vmatprep.subr.mxu0 %v327
    %398 = vmatpush1.msra.mxu0 %v326
    %399 = vmatprep.mubr.f32.mxu0 %v44
    %400 = vmatmul.mubr.f32.gmra.mrb[0].mxu0 %v43
    %v401 = vpop.f32.mrb[0].mxu0
    %v402 = vadd.f32 0.0, %v401
    %v403 = vpop.f32.mrb[0].mxu0
    %v404 = vadd.f32 0.0, %v403
    %405 = vmatprep.mubr.f32.mxu0 %v46
    %406 = vmatmul.mubr.f32.gmra.mrb[0].mxu0 %v45
    %v407 = vpop.f32.mrb[0].mxu0
    %v408 = vadd.f32 0.0, %v407
    %v409 = vpop.f32.mrb[0].mxu0
    %v410 = vadd.f32 0.0, %v409
    %411 = vdwg.mxu0
    %412 = vmatprep.subr.mxu0 %v50
    %413 = vmatpush1.msra.mxu0 %v49
    %414 = vmatprep.subr.mxu0 %v59
    %415 = vmatpush1.msra.mxu0 %v58
    %416 = vmatprep.subr.mxu0 %v68
    %417 = vmatpush1.msra.mxu0 %v67
    %418 = vmatprep.subr.mxu0 %v77
    %419 = vmatpush1.msra.mxu0 %v76
    %420 = vmatprep.subr.mxu0 %v86
    %421 = vmatpush1.msra.mxu0 %v85
    %422 = vmatprep.subr.mxu0 %v95
    %423 = vmatpush1.msra.mxu0 %v94
    %424 = vmatprep.subr.mxu0 %v104
    %425 = vmatpush1.msra.mxu0 %v103
    %426 = vmatprep.subr.mxu0 %v113
    %427 = vmatpush1.msra.mxu0 %v112
    %428 = vmatprep.subr.mxu0 %v122
    %429 = vmatpush1.msra.mxu0 %v121
    %430 = vmatprep.subr.mxu0 %v131
    %431 = vmatpush1.msra.mxu0 %v130
    %432 = vmatprep.subr.mxu0 %v140
    %433 = vmatpush1.msra.mxu0 %v139
    %434 = vmatprep.subr.mxu0 %v149
    %435 = vmatpush1.msra.mxu0 %v148
    %436 = vmatprep.subr.mxu0 %v158
    %437 = vmatpush1.msra.mxu0 %v157
    %438 = vmatprep.subr.mxu0 %v167
    %439 = vmatpush1.msra.mxu0 %v166
    %440 = vmatprep.subr.mxu0 %v176
    %441 = vmatpush1.msra.mxu0 %v175
    %442 = vmatprep.subr.mxu0 %v185
    %443 = vmatpush1.msra.mxu0 %v184
    %444 = vmatprep.subr.mxu0 %v194
    %445 = vmatpush1.msra.mxu0 %v193
    %446 = vmatprep.subr.mxu0 %v203
    %447 = vmatpush1.msra.mxu0 %v202
    %448 = vmatprep.subr.mxu0 %v212
    %449 = vmatpush1.msra.mxu0 %v211
    %450 = vmatprep.subr.mxu0 %v221
    %451 = vmatpush1.msra.mxu0 %v220
    %452 = vmatprep.subr.mxu0 %v230
    %453 = vmatpush1.msra.mxu0 %v229
    %454 = vmatprep.subr.mxu0 %v239
    %455 = vmatpush1.msra.mxu0 %v238
    %456 = vmatprep.subr.mxu0 %v248
    %457 = vmatpush1.msra.mxu0 %v247
    %458 = vmatprep.subr.mxu0 %v257
    %459 = vmatpush1.msra.mxu0 %v256
    %460 = vmatprep.subr.mxu0 %v266
    %461 = vmatpush1.msra.mxu0 %v265
    %462 = vmatprep.subr.mxu0 %v275
    %463 = vmatpush1.msra.mxu0 %v274
    %464 = vmatprep.subr.mxu0 %v284
    %465 = vmatpush1.msra.mxu0 %v283
    %466 = vmatprep.subr.mxu0 %v293
    %467 = vmatpush1.msra.mxu0 %v292
    %468 = vmatprep.subr.mxu0 %v302
    %469 = vmatpush1.msra.mxu0 %v301
    %470 = vmatprep.subr.mxu0 %v311
    %471 = vmatpush1.msra.mxu0 %v310
    %472 = vmatprep.subr.mxu0 %v320
    %473 = vmatpush1.msra.mxu0 %v319
    %474 = vmatprep.subr.mxu0 %v329
    %475 = vmatpush1.msra.mxu0 %v328
    %476 = vmatprep.mubr.f32.mxu0 %v44
    %477 = vmatmul.mubr.f32.gmra.mrb[0].mxu0 %v43
    %v478 = vpop.f32.mrb[0].mxu0
    %v479 = vadd.f32 0.0, %v478
    %v480 = vpop.f32.mrb[0].mxu0
    %v481 = vadd.f32 0.0, %v480
    %482 = vmatprep.mubr.f32.mxu0 %v46
    %483 = vmatmul.mubr.f32.gmra.mrb[0].mxu0 %v45
    %v484 = vpop.f32.mrb[0].mxu0
    %v485 = vadd.f32 0.0, %v484
    %v486 = vpop.f32.mrb[0].mxu0
    %v487 = vadd.f32 0.0, %v486
    %488 = vdwg.mxu0
    %489 = vmatprep.subr.mxu0 %v52
    %490 = vmatpush1.msra.mxu0 %v51
    %491 = vmatprep.subr.mxu0 %v61
    %492 = vmatpush1.msra.mxu0 %v60
    %493 = vmatprep.subr.mxu0 %v70
    %494 = vmatpush1.msra.mxu0 %v69
    %495 = vmatprep.subr.mxu0 %v79
    %496 = vmatpush1.msra.mxu0 %v78
    %497 = vmatprep.subr.mxu0 %v88
    %498 = vmatpush1.msra.mxu0 %v87
    %499 = vmatprep.subr.mxu0 %v97
    %500 = vmatpush1.msra.mxu0 %v96
    %501 = vmatprep.subr.mxu0 %v106
    %502 = vmatpush1.msra.mxu0 %v105
    %503 = vmatprep.subr.mxu0 %v115
    %504 = vmatpush1.msra.mxu0 %v114
    %505 = vmatprep.subr.mxu0 %v124
    %506 = vmatpush1.msra.mxu0 %v123
    %507 = vmatprep.subr.mxu0 %v133
    %508 = vmatpush1.msra.mxu0 %v132
    %509 = vmatprep.subr.mxu0 %v142
    %510 = vmatpush1.msra.mxu0 %v141
    %511 = vmatprep.subr.mxu0 %v151
    %512 = vmatpush1.msra.mxu0 %v150
    %513 = vmatprep.subr.mxu0 %v160
    %514 = vmatpush1.msra.mxu0 %v159
    %515 = vmatprep.subr.mxu0 %v169
    %516 = vmatpush1.msra.mxu0 %v168
    %517 = vmatprep.subr.mxu0 %v178
    %518 = vmatpush1.msra.mxu0 %v177
    %519 = vmatprep.subr.mxu0 %v187
    %520 = vmatpush1.msra.mxu0 %v186
    %521 = vmatprep.subr.mxu0 %v196
    %522 = vmatpush1.msra.mxu0 %v195
    %523 = vmatprep.subr.mxu0 %v205
    %524 = vmatpush1.msra.mxu0 %v204
    %525 = vmatprep.subr.mxu0 %v214
    %526 = vmatpush1.msra.mxu0 %v213
    %527 = vmatprep.subr.mxu0 %v223
    %528 = vmatpush1.msra.mxu0 %v222
    %529 = vmatprep.subr.mxu0 %v232
    %530 = vmatpush1.msra.mxu0 %v231
    %531 = vmatprep.subr.mxu0 %v241
    %532 = vmatpush1.msra.mxu0 %v240
    %533 = vmatprep.subr.mxu0 %v250
    %534 = vmatpush1.msra.mxu0 %v249
    %535 = vmatprep.subr.mxu0 %v259
    %536 = vmatpush1.msra.mxu0 %v258
    %537 = vmatprep.subr.mxu0 %v268
    %538 = vmatpush1.msra.mxu0 %v267
    %539 = vmatprep.subr.mxu0 %v277
    %540 = vmatpush1.msra.mxu0 %v276
    %541 = vmatprep.subr.mxu0 %v286
    %542 = vmatpush1.msra.mxu0 %v285
    %543 = vmatprep.subr.mxu0 %v295
    %544 = vmatpush1.msra.mxu0 %v294
    %545 = vmatprep.subr.mxu0 %v304
    %546 = vmatpush1.msra.mxu0 %v303
    %547 = vmatprep.subr.mxu0 %v313
    %548 = vmatpush1.msra.mxu0 %v312
    %549 = vmatprep.subr.mxu0 %v322
    %550 = vmatpush1.msra.mxu0 %v321
    %551 = vmatprep.subr.mxu0 %v331
    %552 = vmatpush1.msra.mxu0 %v330
    %553 = vmatprep.mubr.f32.mxu0 %v44
    %554 = vmatmul.mubr.f32.gmra.mrb[0].mxu0 %v43
    %v555 = vpop.f32.mrb[0].mxu0
    %v556 = vadd.f32 0.0, %v555
    %v557 = vpop.f32.mrb[0].mxu0
    %v558 = vadd.f32 0.0, %v557
    %559 = vmatprep.mubr.f32.mxu0 %v46
    %560 = vmatmul.mubr.f32.gmra.mrb[0].mxu0 %v45
    %v561 = vpop.f32.mrb[0].mxu0
    %v562 = vadd.f32 0.0, %v561
    %v563 = vpop.f32.mrb[0].mxu0
    %v564 = vadd.f32 0.0, %v563
    %565 = vdwg.mxu0
    %566 = vmatprep.subr.mxu0 %v54
    %567 = vmatpush1.msra.mxu0 %v53
    %568 = vmatprep.subr.mxu0 %v63
    %569 = vmatpush1.msra.mxu0 %v62
    %570 = vmatprep.subr.mxu0 %v72
    %571 = vmatpush1.msra.mxu0 %v71
    %572 = vmatprep.subr.mxu0 %v81
    %573 = vmatpush1.msra.mxu0 %v80
    %574 = vmatprep.subr.mxu0 %v90
    %575 = vmatpush1.msra.mxu0 %v89
    %576 = vmatprep.subr.mxu0 %v99
    %577 = vmatpush1.msra.mxu0 %v98
    %578 = vmatprep.subr.mxu0 %v108
    %579 = vmatpush1.msra.mxu0 %v107
    %580 = vmatprep.subr.mxu0 %v117
    %581 = vmatpush1.msra.mxu0 %v116
    %582 = vmatprep.subr.mxu0 %v126
    %583 = vmatpush1.msra.mxu0 %v125
    %584 = vmatprep.subr.mxu0 %v135
    %585 = vmatpush1.msra.mxu0 %v134
    %586 = vmatprep.subr.mxu0 %v144
    %587 = vmatpush1.msra.mxu0 %v143
    %588 = vmatprep.subr.mxu0 %v153
    %589 = vmatpush1.msra.mxu0 %v152
    %590 = vmatprep.subr.mxu0 %v162
    %591 = vmatpush1.msra.mxu0 %v161
    %592 = vmatprep.subr.mxu0 %v171
    %593 = vmatpush1.msra.mxu0 %v170
    %594 = vmatprep.subr.mxu0 %v180
    %595 = vmatpush1.msra.mxu0 %v179
    %596 = vmatprep.subr.mxu0 %v189
    %597 = vmatpush1.msra.mxu0 %v188
    %598 = vmatprep.subr.mxu0 %v198
    %599 = vmatpush1.msra.mxu0 %v197
    %600 = vmatprep.subr.mxu0 %v207
    %601 = vmatpush1.msra.mxu0 %v206
    %602 = vmatprep.subr.mxu0 %v216
    %603 = vmatpush1.msra.mxu0 %v215
    %604 = vmatprep.subr.mxu0 %v225
    %605 = vmatpush1.msra.mxu0 %v224
    %606 = vmatprep.subr.mxu0 %v234
    %607 = vmatpush1.msra.mxu0 %v233
    %608 = vmatprep.subr.mxu0 %v243
    %609 = vmatpush1.msra.mxu0 %v242
    %610 = vmatprep.subr.mxu0 %v252
    %611 = vmatpush1.msra.mxu0 %v251
    %612 = vmatprep.subr.mxu0 %v261
    %613 = vmatpush1.msra.mxu0 %v260
    %614 = vmatprep.subr.mxu0 %v270
    %615 = vmatpush1.msra.mxu0 %v269
    %616 = vmatprep.subr.mxu0 %v279
    %617 = vmatpush1.msra.mxu0 %v278
    %618 = vmatprep.subr.mxu0 %v288
    %619 = vmatpush1.msra.mxu0 %v287
    %620 = vmatprep.subr.mxu0 %v297
    %621 = vmatpush1.msra.mxu0 %v296
    %622 = vmatprep.subr.mxu0 %v306
    %623 = vmatpush1.msra.mxu0 %v305
    %624 = vmatprep.subr.mxu0 %v315
    %625 = vmatpush1.msra.mxu0 %v314
    %626 = vmatprep.subr.mxu0 %v324
    %627 = vmatpush1.msra.mxu0 %v323
    %628 = vmatprep.subr.mxu0 %v333
    %629 = vmatpush1.msra.mxu0 %v332
    %630 = vmatprep.mubr.f32.mxu0 %v44
    %631 = vmatmul.mubr.f32.gmra.mrb[0].mxu0 %v43
    %v632 = vpop.f32.mrb[0].mxu0
    %v633 = vadd.f32 0.0, %v632
    %v634 = vpop.f32.mrb[0].mxu0
    %v635 = vadd.f32 0.0, %v634
    %636 = vmatprep.mubr.f32.mxu0 %v46
    %637 = vmatmul.mubr.f32.gmra.mrb[0].mxu0 %v45
    %v638 = vpop.f32.mrb[0].mxu0
    %v639 = vadd.f32 0.0, %v638
    %v640 = vpop.f32.mrb[0].mxu0
    %v641 = vadd.f32 0.0, %v640
    %642 = vdwg.mxu0
    %643 = vmatprep.subr.mxu0 0.0
    %644 = vmatpush1.msra.mxu0 %v55
    %645 = vmatprep.subr.mxu0 0.0
    %646 = vmatpush1.msra.mxu0 %v64
    %647 = vmatprep.subr.mxu0 0.0
    %648 = vmatpush1.msra.mxu0 %v73
    %649 = vmatprep.subr.mxu0 0.0
    %650 = vmatpush1.msra.mxu0 %v82
    %651 = vmatprep.subr.mxu0 0.0
    %652 = vmatpush1.msra.mxu0 %v91
    %653 = vmatprep.subr.mxu0 0.0
    %654 = vmatpush1.msra.mxu0 %v100
    %655 = vmatprep.subr.mxu0 0.0
    %656 = vmatpush1.msra.mxu0 %v109
    %657 = vmatprep.subr.mxu0 0.0
    %658 = vmatpush1.msra.mxu0 %v118
    %659 = vmatprep.subr.mxu0 0.0
    %660 = vmatpush1.msra.mxu0 %v127
    %661 = vmatprep.subr.mxu0 0.0
    %662 = vmatpush1.msra.mxu0 %v136
    %663 = vmatprep.subr.mxu0 0.0
    %664 = vmatpush1.msra.mxu0 %v145
    %665 = vmatprep.subr.mxu0 0.0
    %666 = vmatpush1.msra.mxu0 %v154
    %667 = vmatprep.subr.mxu0 0.0
    %668 = vmatpush1.msra.mxu0 %v163
    %669 = vmatprep.subr.mxu0 0.0
    %670 = vmatpush1.msra.mxu0 %v172
    %671 = vmatprep.subr.mxu0 0.0
    %672 = vmatpush1.msra.mxu0 %v181
    %673 = vmatprep.subr.mxu0 0.0
    %674 = vmatpush1.msra.mxu0 %v190
    %675 = vmatprep.subr.mxu0 0.0
    %676 = vmatpush1.msra.mxu0 %v199
    %677 = vmatprep.subr.mxu0 0.0
    %678 = vmatpush1.msra.mxu0 %v208
    %679 = vmatprep.subr.mxu0 0.0
    %680 = vmatpush1.msra.mxu0 %v217
    %681 = vmatprep.subr.mxu0 0.0
    %682 = vmatpush1.msra.mxu0 %v226
    %683 = vmatprep.subr.mxu0 0.0
    %684 = vmatpush1.msra.mxu0 %v235
    %685 = vmatprep.subr.mxu0 0.0
    %686 = vmatpush1.msra.mxu0 %v244
    %687 = vmatprep.subr.mxu0 0.0
    %688 = vmatpush1.msra.mxu0 %v253
    %689 = vmatprep.subr.mxu0 0.0
    %690 = vmatpush1.msra.mxu0 %v262
    %691 = vmatprep.subr.mxu0 0.0
    %692 = vmatpush1.msra.mxu0 %v271
    %693 = vmatprep.subr.mxu0 0.0
    %694 = vmatpush1.msra.mxu0 %v280
    %695 = vmatprep.subr.mxu0 0.0
    %696 = vmatpush1.msra.mxu0 %v289
    %697 = vmatprep.subr.mxu0 0.0
    %698 = vmatpush1.msra.mxu0 %v298
    %699 = vmatprep.subr.mxu0 0.0
    %700 = vmatpush1.msra.mxu0 %v307
    %701 = vmatprep.subr.mxu0 0.0
    %702 = vmatpush1.msra.mxu0 %v316
    %703 = vmatprep.subr.mxu0 0.0
    %704 = vmatpush1.msra.mxu0 %v325
    %705 = vmatprep.subr.mxu0 0.0
    %706 = vmatpush1.msra.mxu0 %v334
    %707 = vmatprep.mubr.f32.mxu0 %v44
    %708 = vmatmul.mubr.f32.gmra.mrb[0].mxu0 %v43
    %v709 = vpop.f32.mrb[0].mxu0
    %v710 = vadd.f32 0.0, %v709
    %v711 = vpop.f32.mrb[0].mxu0
    %712 = vmatprep.mubr.f32.mxu0 %v46
    %713 = vmatmul.mubr.f32.gmra.mrb[0].mxu0 %v45
    %v714 = vpop.f32.mrb[0].mxu0
    %v715 = vadd.f32 0.0, %v714
    %v716 = vpop.f32.mrb[0].mxu0
    %717 = vdwg.mxu0
    %718 = vst [vmem:[#allocation7] sm:$0xff] %v710
    %719 = vst [vmem:[#allocation7 + $0x8] sm:$0xff] %v715
    %v720 = vadd.f32 %v402, %v404
    %v721 = vadd.f32 %v720, %v479
    %v722 = vadd.f32 %v721, %v481
    %v723 = vadd.f32 %v722, %v556
    %v724 = vadd.f32 %v723, %v558
    %v725 = vadd.f32 %v724, %v633
    %v726 = vadd.f32 %v725, %v635
    %727 = vadd.xlane.f32.xlu0 %v726
    %v728 = vpop.xlane.xlu0 %727
    %v729 = vadd.f32 %v408, %v410
    %v730 = vadd.f32 %v729, %v485
    %v731 = vadd.f32 %v730, %v487
    %v732 = vadd.f32 %v731, %v562
    %v733 = vadd.f32 %v732, %v564
    %v734 = vadd.f32 %v733, %v639
    %v735 = vadd.f32 %v734, %v641
    %736 = vadd.xlane.f32.xlu0 %v735
    %v737 = vpop.xlane.xlu0 %736
    %v738 = vadd.f32 %v728, %v737
    %v739 = vmul.f32 %v738, 0.00048828125
    %v740 = vsub.f32 %v402, %v739
    %v741 = vsub.f32 %v404, %v739
    %v742 = vsub.f32 %v479, %v739
    %v743 = vsub.f32 %v481, %v739
    %v744 = vsub.f32 %v556, %v739
    %v745 = vsub.f32 %v558, %v739
    %v746 = vsub.f32 %v633, %v739
    %v747 = vsub.f32 %v635, %v739
    %v748 = vsub.f32 %v408, %v739
    %v749 = vsub.f32 %v410, %v739
    %v750 = vsub.f32 %v485, %v739
    %v751 = vsub.f32 %v487, %v739
    %v752 = vsub.f32 %v562, %v739
    %v753 = vsub.f32 %v564, %v739
    %v754 = vsub.f32 %v639, %v739
    %v755 = vsub.f32 %v641, %v739
    %v756 = vmul.f32 %v740, %v740
    %v757 = vmul.f32 %v741, %v741
    %v758 = vmul.f32 %v742, %v742
    %v759 = vmul.f32 %v743, %v743
    %v760 = vmul.f32 %v744, %v744
    %v761 = vmul.f32 %v745, %v745
    %v762 = vmul.f32 %v746, %v746
    %v763 = vmul.f32 %v747, %v747
    %v764 = vmul.f32 %v748, %v748
    %v765 = vmul.f32 %v749, %v749
    %v766 = vmul.f32 %v750, %v750
    %v767 = vmul.f32 %v751, %v751
    %v768 = vmul.f32 %v752, %v752
    %v769 = vmul.f32 %v753, %v753
    %v770 = vmul.f32 %v754, %v754
    %v771 = vmul.f32 %v755, %v755
    %v772 = vadd.f32 %v756, %v757
    %v773 = vadd.f32 %v772, %v758
    %v774 = vadd.f32 %v773, %v759
    %v775 = vadd.f32 %v774, %v760
    %v776 = vadd.f32 %v775, %v761
    %v777 = vadd.f32 %v776, %v762
    %v778 = vadd.f32 %v777, %v763
    %779 = vadd.xlane.f32.xlu0 %v778
    %v780 = vpop.xlane.xlu0 %779
    %v781 = vadd.f32 %v764, %v765
    %v782 = vadd.f32 %v781, %v766
    %v783 = vadd.f32 %v782, %v767
    %v784 = vadd.f32 %v783, %v768
    %v785 = vadd.f32 %v784, %v769
    %v786 = vadd.f32 %v785, %v770
    %v787 = vadd.f32 %v786, %v771
    %788 = vadd.xlane.f32.xlu0 %v787
    %v789 = vpop.xlane.xlu0 %788
    %v790 = vadd.f32 %v780, %v789
    %v791 = vmul.f32 %v790, 0.00048828125
    %v792 = vrsqrt.pop %v791
    %v793 = vmul.f32 %v740, %v792
    %v794 = vmul.f32 %v741, %v792
    %v795 = vmul.f32 %v742, %v792
    %v796 = vmul.f32 %v743, %v792
    %v797 = vmul.f32 %v744, %v792
    %v798 = vmul.f32 %v745, %v792
    %v799 = vmul.f32 %v746, %v792
    %v800 = vmul.f32 %v747, %v792
    %v801 = vmul.f32 %v748, %v792
    %v802 = vmul.f32 %v749, %v792
    %v803 = vmul.f32 %v750, %v792
    %v804 = vmul.f32 %v751, %v792
    %v805 = vmul.f32 %v752, %v792
    %v806 = vmul.f32 %v753, %v792
    %v807 = vmul.f32 %v754, %v792
    %v808 = vmul.f32 %v755, %v792
    %809 = vst [vmem:[#allocation8] sm:$0xff] %v793
    %810 = vst [vmem:[#allocation8 + $0x8] sm:$0xff] %v794
    %811 = vst [vmem:[#allocation8 + $0x10] sm:$0xff] %v795
    %812 = vst [vmem:[#allocation8 + $0x18] sm:$0xff] %v796
    %813 = vst [vmem:[#allocation8 + $0x20] sm:$0xff] %v797
    %814 = vst [vmem:[#allocation8 + $0x28] sm:$0xff] %v798
    %815 = vst [vmem:[#allocation8 + $0x30] sm:$0xff] %v799
    %816 = vst [vmem:[#allocation8 + $0x38] sm:$0xff] %v800
    %817 = vst [vmem:[#allocation8 + $0x40] sm:$0xff] %v801
    %818 = vst [vmem:[#allocation8 + $0x48] sm:$0xff] %v802
    %819 = vst [vmem:[#allocation8 + $0x50] sm:$0xff] %v803
    %820 = vst [vmem:[#allocation8 + $0x58] sm:$0xff] %v804
    %821 = vst [vmem:[#allocation8 + $0x60] sm:$0xff] %v805
    %822 = vst [vmem:[#allocation8 + $0x68] sm:$0xff] %v806
    %823 = vst [vmem:[#allocation8 + $0x70] sm:$0xff] %v807
    %824 = vst [vmem:[#allocation8 + $0x78] sm:$0xff] %v808
    // Predicated region
    $region18: #{tpu_custom_call.1} parent=1 // pred_check
      _
    $region19: #{tpu_custom_call.1} parent=1 // pred_check_branch
      %826 = sbr.rel (0) target = $region21
    $region20: #{tpu_custom_call.1} parent=1 // pred_region
      %s828 = ssub.s32 256, 256
      %829 = vsyncadd [#allocation4], %s828
      %s830 = sshll.u32 [#allocation7], 4
      %s831 = int_to_ptr.vmem [resolvable:$true] %s830
      %836 = dma.vmem_to_hbm [thread:$0]  %s831, 256, %s2, [#allocation4], 128, 128, 8
    $region21: #{tpu_custom_call.1} parent=1 // pred_fallthru
      _
    // Predicated region
    $region22: #{tpu_custom_call.1} parent=1 // pred_check
      _
    $region23: #{tpu_custom_call.1} parent=1 // pred_check_branch
      %838 = sbr.rel (0) target = $region25
    $region24: #{tpu_custom_call.1} parent=1 // pred_region
      %s840 = ssub.s32 2048, 2048
      %841 = vsyncadd [#allocation9], %s840
      %s842 = sshll.u32 [#allocation8], 4
      %s843 = int_to_ptr.vmem [resolvable:$true] %s842
      %848 = dma.vmem_to_hbm [thread:$0]  %s843, 2048, %s3, [#allocation9], 1024, 1024, 64
    $region25: #{tpu_custom_call.1} parent=1 // pred_fallthru
      _
    // Predicated region
    $region26: #{tpu_custom_call.1} parent=1 // pred_check
      _
    $region27: #{tpu_custom_call.1} parent=1 // pred_check_branch
      %850 = sbr.rel (0) target = $region29
    $region28: #{tpu_custom_call.1} parent=1 // pred_region
      %851 = dma.done [#allocation4], 256
    $region29: #{tpu_custom_call.1} parent=1 // pred_fallthru
      _
    // Predicated region
    $region30: #{tpu_custom_call.1} parent=1 // pred_check
      _
    $region31: #{tpu_custom_call.1} parent=1 // pred_check_branch
      %853 = sbr.rel (0) target = $region33
    $region32: #{tpu_custom_call.1} parent=1 // pred_region
      %854 = dma.done [#allocation9], 2048
    $region33: #{tpu_custom_call.1} parent=1 // pred_fallthru
      _
    %855 = vsyncpa [#allocation3], 1
    %856 = vsyncpa [#allocation6], 1
    %857 = vsyncpa [#allocation4], 1
    %858 = vsyncpa [#allocation9], 1

</llo_original>
